<compile_context>
chip_gen: v7x
topology: tpu7x:2x2x1
jax: 0.10.0
libtpu: 0.0.40
codegen_flags: <defaults>
</compile_context>

<pallas_src>
import math

import jax
import jax.numpy as jnp
from jax import lax
from jax.experimental import pallas as pl
from jax.experimental.pallas import tpu as pltpu


def _round_up(n, m):
    return ((n + m - 1) // m) * m


def _pad_to(x, shape):
    pads = [(0, t - s) for s, t in zip(x.shape, shape)]
    if all(p == (0, 0) for p in pads):
        return x
    return jnp.pad(x, pads)


# ---------------------------------------------------------------------------
# Kernel 1: stacked tanh-RNN recurrence over a chunk of timesteps.
# ---------------------------------------------------------------------------
def _make_recurrence(num_layers, seq_len, t_chunk, batch_p, emb_p, hidden_p):
    num_chunks = seq_len // t_chunk

    def kernel(*args):
        emb_ref, h0_ref = args[0], args[1]
        w_refs = args[2:2 + 3 * num_layers]
        top_ref = args[2 + 3 * num_layers]     # top-layer hidden, per timestep
        hout_ref = args[3 + 3 * num_layers]    # resident hidden state (L,B,H)

        @pl.when(pl.program_id(0) == 0)
        def _():
            hout_ref[...] = h0_ref[...]

        # Hoist (1,H) -> (B,H) bias broadcasts out of the time loop.
        biases = [jnp.broadcast_to(w_refs[3 * l + 2][...], (batch_p, hidden_p))
                  for l in range(num_layers)]

        def step(t, carry):
            # TODO(synk): apply dropout via pltpu.prng_* here if dp_keep_prob < 1;
            # with dp_keep_prob == 1.0 nn.Dropout is the identity.
            x = emb_ref[t].astype(jnp.bfloat16)                     # (B, E)
            h_new = None
            for l in range(num_layers):
                wx_ref = w_refs[3 * l + 0]
                wh_ref = w_refs[3 * l + 1]
                h = hout_ref[l]                                     # (B, H) f32
                pre = (jnp.dot(x, wx_ref[...],
                               preferred_element_type=jnp.float32)
                       + jnp.dot(h.astype(jnp.bfloat16), wh_ref[...],
                                 preferred_element_type=jnp.float32)
                       + biases[l])
                h_new = jnp.tanh(pre)                               # f32 gate math
                hout_ref[l] = h_new
                x = h_new.astype(jnp.bfloat16)
            top_ref[t] = h_new                                      # f32
            return carry

        lax.fori_loop(0, t_chunk, step, 0, unroll=True)

    def const_spec(shape):
        return pl.BlockSpec(shape, lambda c, _n=len(shape): (0,) * _n)

    in_specs = [
        pl.BlockSpec((t_chunk, batch_p, emb_p), lambda c: (c, 0, 0)),   # embeddings
        const_spec((num_layers, batch_p, hidden_p)),                    # h0
    ]
    for l in range(num_layers):
        in_sz = emb_p if l == 0 else hidden_p
        in_specs += [const_spec((in_sz, hidden_p)),        # Wx_l (bf16)
                     const_spec((hidden_p, hidden_p)),     # Wh_l (bf16)
                     const_spec((1, hidden_p))]            # b_l = bWx_l + bWh_l

    out_specs = (
        pl.BlockSpec((t_chunk, batch_p, hidden_p), lambda c: (c, 0, 0)),  # top-layer h
        const_spec((num_layers, batch_p, hidden_p)),                      # final hidden
    )

    return pl.pallas_call(
        kernel,
        out_shape=(jax.ShapeDtypeStruct((seq_len, batch_p, hidden_p), jnp.float32),
                   jax.ShapeDtypeStruct((num_layers, batch_p, hidden_p), jnp.float32)),
        grid_spec=pltpu.PrefetchScalarGridSpec(
            num_scalar_prefetch=0,
            grid=(num_chunks,),
            in_specs=in_specs,
            out_specs=out_specs,
        ),
        compiler_params=pltpu.CompilerParams(
            dimension_semantics=("arbitrary",),        # serial recurrence carry
            vmem_limit_bytes=32 * 1024 * 1024),
    )


# ---------------------------------------------------------------------------
# Kernel 2: hoisted vocab projection  logits = (T*B, H) @ (H, V) + b
# ---------------------------------------------------------------------------
def _make_projection(rows, hidden_p, vocab_p, tm):
    def kernel(x_ref, w_ref, b_ref, o_ref):
        o_ref[...] = (jnp.dot(x_ref[...].astype(jnp.bfloat16), w_ref[...],
                              preferred_element_type=jnp.float32)
                      + b_ref[...])

    return pl.pallas_call(
        kernel,
        out_shape=jax.ShapeDtypeStruct((rows, vocab_p), jnp.float32),
        grid_spec=pltpu.PrefetchScalarGridSpec(
            num_scalar_prefetch=0,
            grid=(rows // tm,),
            in_specs=[pl.BlockSpec((tm, hidden_p), lambda i: (i, 0)),
                      pl.BlockSpec((hidden_p, vocab_p), lambda i: (0, 0)),
                      pl.BlockSpec((1, vocab_p), lambda i: (0, 0))],
            out_specs=pl.BlockSpec((tm, vocab_p), lambda i: (i, 0)),
        ),
        compiler_params=pltpu.CompilerParams(
            dimension_semantics=("parallel",),         # megacore-shardable
            vmem_limit_bytes=32 * 1024 * 1024),
    )


# ---------------------------------------------------------------------------
# Wrapper: padding, dtype casts, glue, and the two pallas_calls.
# ---------------------------------------------------------------------------
def rnn_forward(emb_table, Wx_list, bWx_list, Wh_list, bWh_list, Wy, by,
                tokens, h0, *, t_chunk=None):
    seq_len, batch = tokens.shape
    vocab, emb_size = emb_table.shape
    num_layers = len(Wx_list)
    hidden = Wh_list[0].shape[0]

    batch_p = _round_up(batch, 8)
    emb_p = _round_up(emb_size, 128)
    hidden_p = _round_up(hidden, 128)
    vocab_p = _round_up(vocab, 128)

    if t_chunk is None:
        t_chunk = 1
        for c in range(min(seq_len, 32), 0, -1):
            if seq_len % c == 0:
                t_chunk = c
                break
    assert seq_len % t_chunk == 0

    # Embedding lookup (nn.Embedding) as plain-JAX gather glue.
    emb = jnp.take(emb_table, tokens, axis=0)                  # (T, B, E)
    emb = _pad_to(emb, (seq_len, batch_p, emb_p)).astype(jnp.float32)
    h0_p = _pad_to(h0, (num_layers, batch_p, hidden_p)).astype(jnp.float32)

    flat = []
    for l in range(num_layers):
        in_p = emb_p if l == 0 else hidden_p
        wx = _pad_to(Wx_list[l], (in_p, hidden_p)).astype(jnp.bfloat16)
        wh = _pad_to(Wh_list[l], (hidden_p, hidden_p)).astype(jnp.bfloat16)
        b = _pad_to((bWx_list[l] + bWh_list[l]).reshape(1, hidden),
                    (1, hidden_p)).astype(jnp.float32)          # pre-added bias
        flat += [wx, wh, b]

    recurrence = _make_recurrence(num_layers, seq_len, t_chunk,
                                  batch_p, emb_p, hidden_p)
    top_h, h_final_p = recurrence(emb, h0_p, *flat)

    # Hoisted vocab projection over the whole (T*B, H) stack.
    rows = seq_len * batch_p
    tm = rows
    for cand in (512, 256, 128, 64, 32, 16, 8):
        if cand <= rows and rows % cand == 0:
            tm = cand
            break
    wy_p = _pad_to(Wy, (hidden_p, vocab_p)).astype(jnp.bfloat16)
    by_p = _pad_to(by.reshape(1, vocab), (1, vocab_p)).astype(jnp.float32)
    proj = _make_projection(rows, hidden_p, vocab_p, tm)
    logits_p = proj(top_h.reshape(rows, hidden_p), wy_p, by_p)
    logits_p = logits_p.reshape(seq_len, batch_p, vocab_p)

    logits = logits_p[:, :batch, :vocab]
    h_final = h_final_p[:, :batch, :hidden]
    return logits, h_final


# ---------------------------------------------------------------------------
# Parameter init (mirrors RNN.init_weights) and pure-JAX f32 reference.
# ---------------------------------------------------------------------------
def init_params(key, num_layers, emb_size, hidden, vocab):
    keys = iter(jax.random.split(key, 4 * num_layers + 8))

    def unif(shape, lo, hi):
        return jax.random.uniform(next(keys), shape, jnp.float32, lo, hi)

    k = 1.0 / math.sqrt(hidden)
    emb_table = unif((vocab, emb_size), -0.1, 0.1)          # nn.Embedding U(-0.1,0.1)
    Wx_list, bWx_list, Wh_list, bWh_list = [], [], [], []
    for l in range(num_layers):
        in_sz = emb_size if l == 0 else hidden
        # Weights stored transposed vs torch.nn.Linear: (in_features, out_features).
        Wx_list.append(unif((in_sz, hidden), -k, k))
        if l == 0:
            bWx_list.append(jnp.zeros((hidden,), jnp.float32))   # Wx_linear[0]: bias=False
        else:
            bWx_list.append(unif((hidden,), -k, k))
        Wh_list.append(unif((hidden, hidden), -k, k))
        bWh_list.append(unif((hidden,), -k, k))
    Wy = unif((hidden, vocab), -0.1, 0.1)                   # Wy_linear weight U(-0.1,0.1)
    by = jnp.zeros((vocab,), jnp.float32)                   # Wy_linear bias = 0
    return emb_table, Wx_list, bWx_list, Wh_list, bWh_list, Wy, by


def ref_forward(emb_table, Wx_list, bWx_list, Wh_list, bWh_list, Wy, by,
                tokens, h0):
    num_layers = len(Wx_list)
    seq_len = tokens.shape[0]
    emb = jnp.take(emb_table, tokens, axis=0)
    h = h0
    logits = []
    for t in range(seq_len):
        x = emb[t]
        hs = []
        for l in range(num_layers):
            x = jnp.tanh(x @ Wx_list[l] + bWx_list[l]
                         + h[l] @ Wh_list[l] + bWh_list[l])
            hs.append(x)
        h = jnp.stack(hs, axis=0)
        logits.append(x @ Wy + by)
    return jnp.stack(logits, axis=0), h


if __name__ == "__main__":
    emb_size, hidden, vocab = 16, 32, 50
    seq_len, batch, num_layers = 8, 4, 2
    # dp_keep_prob = 1.0  ->  nn.Dropout(0.0) is the identity.

    key = jax.random.PRNGKey(0)
    kp, kt = jax.random.split(key)
    (emb_table, Wx_list, bWx_list, Wh_list, bWh_list, Wy, by) = init_params(
        kp, num_layers, emb_size, hidden, vocab)

    tokens = jax.random.randint(kt, (seq_len, batch), 0, vocab)        # inputs
    h0 = jnp.zeros((num_layers, batch, hidden), jnp.float32)           # init_hidden()

    # t_chunk=4 -> 2 time chunks, exercising the resident-hidden carry path.
    logits, h_final = rnn_forward(emb_table, Wx_list, bWx_list, Wh_list,
                                  bWh_list, Wy, by, tokens, h0, t_chunk=4)
    jax.block_until_ready((logits, h_final))

    ref_logits, ref_h = ref_forward(emb_table, Wx_list, bWx_list, Wh_list,
                                    bWh_list, Wy, by, tokens, h0)

    assert logits.shape == (seq_len, batch, vocab)
    assert h_final.shape == (num_layers, batch, hidden)
    # bf16 matmuls (f32 accumulation) vs f32 reference -> slightly loose tolerance.
    assert jnp.allclose(logits, ref_logits, atol=2e-2, rtol=2e-2)
    assert jnp.allclose(h_final, ref_h, atol=2e-2, rtol=2e-2)
    print("KERNEL_OK")
</pallas_src>

<mosaic_0001>
module attributes {stable_mosaic.version = 11 : i64} {
  func.func @kernel(%arg0: i32, %arg1: memref<4x8x128xf32, #tpu.memory_space<vmem>>, %arg2: memref<2x8x128xf32, #tpu.memory_space<vmem>>, %arg3: memref<128x128xbf16, #tpu.memory_space<vmem>>, %arg4: memref<128x128xbf16, #tpu.memory_space<vmem>>, %arg5: memref<1x128xf32, #tpu.memory_space<vmem>>, %arg6: memref<128x128xbf16, #tpu.memory_space<vmem>>, %arg7: memref<128x128xbf16, #tpu.memory_space<vmem>>, %arg8: memref<1x128xf32, #tpu.memory_space<vmem>>, %arg9: memref<4x8x128xf32, #tpu.memory_space<vmem>>, %arg10: memref<2x8x128xf32, #tpu.memory_space<vmem>>) attributes {dimension_semantics = [#tpu.dimension_semantics<arbitrary>], iteration_bounds = array<i64: 2>, scalar_prefetch = 0 : i64, scratch_operands = 0 : i64, tpu.core_type = #tpu.core_type<tc>, window_params = [{transform_indices = @transform_0, window_bounds = array<i64: 4, 8, 128>}, {pipeline_mode = #tpu.pipeline_mode<synchronous>, transform_indices = @transform_1, window_bounds = array<i64: 2, 8, 128>}, {pipeline_mode = #tpu.pipeline_mode<synchronous>, transform_indices = @transform_2, window_bounds = array<i64: 128, 128>}, {pipeline_mode = #tpu.pipeline_mode<synchronous>, transform_indices = @transform_3, window_bounds = array<i64: 128, 128>}, {pipeline_mode = #tpu.pipeline_mode<synchronous>, transform_indices = @transform_4, window_bounds = array<i64: 1, 128>}, {pipeline_mode = #tpu.pipeline_mode<synchronous>, transform_indices = @transform_5, window_bounds = array<i64: 128, 128>}, {pipeline_mode = #tpu.pipeline_mode<synchronous>, transform_indices = @transform_6, window_bounds = array<i64: 128, 128>}, {pipeline_mode = #tpu.pipeline_mode<synchronous>, transform_indices = @transform_7, window_bounds = array<i64: 1, 128>}, {transform_indices = @transform_8, window_bounds = array<i64: 4, 8, 128>}, {pipeline_mode = #tpu.pipeline_mode<synchronous>, transform_indices = @transform_9, window_bounds = array<i64: 2, 8, 128>}]} {
    %c0_i32 = arith.constant 0 : i32
    %0 = arith.cmpi eq, %arg0, %c0_i32 : i32
    %1 = arith.extui %0 : i1 to i32
    %c0_i32_0 = arith.constant 0 : i32
    %2 = arith.cmpi ne, %1, %c0_i32_0 : i32
    scf.if %2 {
      %c0_115 = arith.constant 0 : index
      %c0_116 = arith.constant 0 : index
      %c0_117 = arith.constant 0 : index
      %149 = vector.load %arg2[%c0_115, %c0_116, %c0_117] : memref<2x8x128xf32, #tpu.memory_space<vmem>>, vector<2x8x128xf32>
      %c0_118 = arith.constant 0 : index
      %c0_119 = arith.constant 0 : index
      %c0_120 = arith.constant 0 : index
      %150 = vector.load %arg10[%c0_118, %c0_119, %c0_120] : memref<2x8x128xf32, #tpu.memory_space<vmem>>, vector<2x8x128xf32>
      tpu.vector_store %arg10[%c0_118, %c0_119, %c0_120], %149 {strides = array<i32>} : memref<2x8x128xf32, #tpu.memory_space<vmem>>, vector<2x8x128xf32>,
    } else {
    }
    %c0 = arith.constant 0 : index
    %c0_1 = arith.constant 0 : index
    %3 = vector.load %arg5[%c0, %c0_1] : memref<1x128xf32, #tpu.memory_space<vmem>>, vector<1x128xf32>
    %4 = vector.shape_cast %3 : vector<1x128xf32> to vector<1x128xf32>
    %5 = vector.broadcast %4 : vector<1x128xf32> to vector<8x128xf32>
    %c0_2 = arith.constant 0 : index
    %c0_3 = arith.constant 0 : index
    %6 = vector.load %arg8[%c0_2, %c0_3] : memref<1x128xf32, #tpu.memory_space<vmem>>, vector<1x128xf32>
    %7 = vector.shape_cast %6 : vector<1x128xf32> to vector<1x128xf32>
    %8 = vector.broadcast %7 : vector<1x128xf32> to vector<8x128xf32>
    %c0_i32_4 = arith.constant 0 : i32
    %9 = arith.index_cast %c0_i32_4 : i32 to index
    %c0_5 = arith.constant 0 : index
    %c0_6 = arith.constant 0 : index
    %10 = vector.load %arg1[%9, %c0_5, %c0_6] : memref<4x8x128xf32, #tpu.memory_space<vmem>>, vector<1x8x128xf32>
    %11 = vector.shape_cast %10 : vector<1x8x128xf32> to vector<8x128xf32>
    %12 = arith.truncf %11 : vector<8x128xf32> to vector<8x128xbf16>
    %c0_7 = arith.constant 0 : index
    %c0_8 = arith.constant 0 : index
    %c0_9 = arith.constant 0 : index
    %13 = vector.load %arg10[%c0_7, %c0_8, %c0_9] : memref<2x8x128xf32, #tpu.memory_space<vmem>>, vector<1x8x128xf32>
    %14 = vector.shape_cast %13 : vector<1x8x128xf32> to vector<8x128xf32>
    %c0_10 = arith.constant 0 : index
    %c0_11 = arith.constant 0 : index
    %15 = vector.load %arg3[%c0_10, %c0_11] : memref<128x128xbf16, #tpu.memory_space<vmem>>, vector<128x128xbf16>
    %cst = arith.constant dense<0.000000e+00> : vector<8x128xf32>
    %16 = tpu.matmul %12, %15, %cst {dimension_numbers = #tpu.dot_dimension_numbers<[1], [0], [0], [1], [0, 0, 1, 1], [], []>} : vector<8x128xbf16>, vector<128x128xbf16>, vector<8x128xf32> -> vector<8x128xf32>
    %17 = arith.truncf %14 : vector<8x128xf32> to vector<8x128xbf16>
    %c0_12 = arith.constant 0 : index
    %c0_13 = arith.constant 0 : index
    %18 = vector.load %arg4[%c0_12, %c0_13] : memref<128x128xbf16, #tpu.memory_space<vmem>>, vector<128x128xbf16>
    %cst_14 = arith.constant dense<0.000000e+00> : vector<8x128xf32>
    %19 = tpu.matmul %17, %18, %cst_14 {dimension_numbers = #tpu.dot_dimension_numbers<[1], [0], [0], [1], [0, 0, 1, 1], [], []>} : vector<8x128xbf16>, vector<128x128xbf16>, vector<8x128xf32> -> vector<8x128xf32>
    %20 = arith.addf %16, %19 : vector<8x128xf32>
    %21 = arith.addf %20, %5 : vector<8x128xf32>
    %22 = math.tanh %21 : vector<8x128xf32>
    %c0_15 = arith.constant 0 : index
    %c0_16 = arith.constant 0 : index
    %c0_17 = arith.constant 0 : index
    %23 = vector.load %arg10[%c0_15, %c0_16, %c0_17] : memref<2x8x128xf32, #tpu.memory_space<vmem>>, vector<1x8x128xf32>
    %24 = vector.shape_cast %23 : vector<1x8x128xf32> to vector<8x128xf32>
    %25 = vector.shape_cast %22 : vector<8x128xf32> to vector<1x8x128xf32>
    tpu.vector_store %arg10[%c0_15, %c0_16, %c0_17], %25 {strides = array<i32>} : memref<2x8x128xf32, #tpu.memory_space<vmem>>, vector<1x8x128xf32>,
    %26 = arith.truncf %22 : vector<8x128xf32> to vector<8x128xbf16>
    %c1 = arith.constant 1 : index
    %c0_18 = arith.constant 0 : index
    %c0_19 = arith.constant 0 : index
    %27 = vector.load %arg10[%c1, %c0_18, %c0_19] : memref<2x8x128xf32, #tpu.memory_space<vmem>>, vector<1x8x128xf32>
    %28 = vector.shape_cast %27 : vector<1x8x128xf32> to vector<8x128xf32>
    %c0_20 = arith.constant 0 : index
    %c0_21 = arith.constant 0 : index
    %29 = vector.load %arg6[%c0_20, %c0_21] : memref<128x128xbf16, #tpu.memory_space<vmem>>, vector<128x128xbf16>
    %cst_22 = arith.constant dense<0.000000e+00> : vector<8x128xf32>
    %30 = tpu.matmul %26, %29, %cst_22 {dimension_numbers = #tpu.dot_dimension_numbers<[1], [0], [0], [1], [0, 0, 1, 1], [], []>} : vector<8x128xbf16>, vector<128x128xbf16>, vector<8x128xf32> -> vector<8x128xf32>
    %31 = arith.truncf %28 : vector<8x128xf32> to vector<8x128xbf16>
    %c0_23 = arith.constant 0 : index
    %c0_24 = arith.constant 0 : index
    %32 = vector.load %arg7[%c0_23, %c0_24] : memref<128x128xbf16, #tpu.memory_space<vmem>>, vector<128x128xbf16>
    %cst_25 = arith.constant dense<0.000000e+00> : vector<8x128xf32>
    %33 = tpu.matmul %31, %32, %cst_25 {dimension_numbers = #tpu.dot_dimension_numbers<[1], [0], [0], [1], [0, 0, 1, 1], [], []>} : vector<8x128xbf16>, vector<128x128xbf16>, vector<8x128xf32> -> vector<8x128xf32>
    %34 = arith.addf %30, %33 : vector<8x128xf32>
    %35 = arith.addf %34, %8 : vector<8x128xf32>
    %36 = math.tanh %35 : vector<8x128xf32>
    %c1_26 = arith.constant 1 : index
    %c0_27 = arith.constant 0 : index
    %c0_28 = arith.constant 0 : index
    %37 = vector.load %arg10[%c1_26, %c0_27, %c0_28] : memref<2x8x128xf32, #tpu.memory_space<vmem>>, vector<1x8x128xf32>
    %38 = vector.shape_cast %37 : vector<1x8x128xf32> to vector<8x128xf32>
    %39 = vector.shape_cast %36 : vector<8x128xf32> to vector<1x8x128xf32>
    tpu.vector_store %arg10[%c1_26, %c0_27, %c0_28], %39 {strides = array<i32>} : memref<2x8x128xf32, #tpu.memory_space<vmem>>, vector<1x8x128xf32>,
    %40 = arith.index_cast %c0_i32_4 : i32 to index
    %c0_29 = arith.constant 0 : index
    %c0_30 = arith.constant 0 : index
    %41 = vector.load %arg9[%40, %c0_29, %c0_30] : memref<4x8x128xf32, #tpu.memory_space<vmem>>, vector<1x8x128xf32>
    %42 = vector.shape_cast %41 : vector<1x8x128xf32> to vector<8x128xf32>
    %43 = vector.shape_cast %36 : vector<8x128xf32> to vector<1x8x128xf32>
    tpu.vector_store %arg9[%40, %c0_29, %c0_30], %43 {strides = array<i32>} : memref<4x8x128xf32, #tpu.memory_space<vmem>>, vector<1x8x128xf32>,
    %c1_i32 = arith.constant 1 : i32
    %44 = arith.index_cast %c1_i32 : i32 to index
    %c0_31 = arith.constant 0 : index
    %c0_32 = arith.constant 0 : index
    %45 = vector.load %arg1[%44, %c0_31, %c0_32] : memref<4x8x128xf32, #tpu.memory_space<vmem>>, vector<1x8x128xf32>
    %46 = vector.shape_cast %45 : vector<1x8x128xf32> to vector<8x128xf32>
    %47 = arith.truncf %46 : vector<8x128xf32> to vector<8x128xbf16>
    %c0_33 = arith.constant 0 : index
    %c0_34 = arith.constant 0 : index
    %c0_35 = arith.constant 0 : index
    %48 = vector.load %arg10[%c0_33, %c0_34, %c0_35] : memref<2x8x128xf32, #tpu.memory_space<vmem>>, vector<1x8x128xf32>
    %49 = vector.shape_cast %48 : vector<1x8x128xf32> to vector<8x128xf32>
    %c0_36 = arith.constant 0 : index
    %c0_37 = arith.constant 0 : index
    %50 = vector.load %arg3[%c0_36, %c0_37] : memref<128x128xbf16, #tpu.memory_space<vmem>>, vector<128x128xbf16>
    %cst_38 = arith.constant dense<0.000000e+00> : vector<8x128xf32>
    %51 = tpu.matmul %47, %50, %cst_38 {dimension_numbers = #tpu.dot_dimension_numbers<[1], [0], [0], [1], [0, 0, 1, 1], [], []>} : vector<8x128xbf16>, vector<128x128xbf16>, vector<8x128xf32> -> vector<8x128xf32>
    %52 = arith.truncf %49 : vector<8x128xf32> to vector<8x128xbf16>
    %c0_39 = arith.constant 0 : index
    %c0_40 = arith.constant 0 : index
    %53 = vector.load %arg4[%c0_39, %c0_40] : memref<128x128xbf16, #tpu.memory_space<vmem>>, vector<128x128xbf16>
    %cst_41 = arith.constant dense<0.000000e+00> : vector<8x128xf32>
    %54 = tpu.matmul %52, %53, %cst_41 {dimension_numbers = #tpu.dot_dimension_numbers<[1], [0], [0], [1], [0, 0, 1, 1], [], []>} : vector<8x128xbf16>, vector<128x128xbf16>, vector<8x128xf32> -> vector<8x128xf32>
    %55 = arith.addf %51, %54 : vector<8x128xf32>
    %56 = arith.addf %55, %5 : vector<8x128xf32>
    %57 = math.tanh %56 : vector<8x128xf32>
    %c0_42 = arith.constant 0 : index
    %c0_43 = arith.constant 0 : index
    %c0_44 = arith.constant 0 : index
    %58 = vector.load %arg10[%c0_42, %c0_43, %c0_44] : memref<2x8x128xf32, #tpu.memory_space<vmem>>, vector<1x8x128xf32>
    %59 = vector.shape_cast %58 : vector<1x8x128xf32> to vector<8x128xf32>
    %60 = vector.shape_cast %57 : vector<8x128xf32> to vector<1x8x128xf32>
    tpu.vector_store %arg10[%c0_42, %c0_43, %c0_44], %60 {strides = array<i32>} : memref<2x8x128xf32, #tpu.memory_space<vmem>>, vector<1x8x128xf32>,
    %61 = arith.truncf %57 : vector<8x128xf32> to vector<8x128xbf16>
    %c1_45 = arith.constant 1 : index
    %c0_46 = arith.constant 0 : index
    %c0_47 = arith.constant 0 : index
    %62 = vector.load %arg10[%c1_45, %c0_46, %c0_47] : memref<2x8x128xf32, #tpu.memory_space<vmem>>, vector<1x8x128xf32>
    %63 = vector.shape_cast %62 : vector<1x8x128xf32> to vector<8x128xf32>
    %c0_48 = arith.constant 0 : index
    %c0_49 = arith.constant 0 : index
    %64 = vector.load %arg6[%c0_48, %c0_49] : memref<128x128xbf16, #tpu.memory_space<vmem>>, vector<128x128xbf16>
    %cst_50 = arith.constant dense<0.000000e+00> : vector<8x128xf32>
    %65 = tpu.matmul %61, %64, %cst_50 {dimension_numbers = #tpu.dot_dimension_numbers<[1], [0], [0], [1], [0, 0, 1, 1], [], []>} : vector<8x128xbf16>, vector<128x128xbf16>, vector<8x128xf32> -> vector<8x128xf32>
    %66 = arith.truncf %63 : vector<8x128xf32> to vector<8x128xbf16>
    %c0_51 = arith.constant 0 : index
    %c0_52 = arith.constant 0 : index
    %67 = vector.load %arg7[%c0_51, %c0_52] : memref<128x128xbf16, #tpu.memory_space<vmem>>, vector<128x128xbf16>
    %cst_53 = arith.constant dense<0.000000e+00> : vector<8x128xf32>
    %68 = tpu.matmul %66, %67, %cst_53 {dimension_numbers = #tpu.dot_dimension_numbers<[1], [0], [0], [1], [0, 0, 1, 1], [], []>} : vector<8x128xbf16>, vector<128x128xbf16>, vector<8x128xf32> -> vector<8x128xf32>
    %69 = arith.addf %65, %68 : vector<8x128xf32>
    %70 = arith.addf %69, %8 : vector<8x128xf32>
    %71 = math.tanh %70 : vector<8x128xf32>
    %c1_54 = arith.constant 1 : index
    %c0_55 = arith.constant 0 : index
    %c0_56 = arith.constant 0 : index
    %72 = vector.load %arg10[%c1_54, %c0_55, %c0_56] : memref<2x8x128xf32, #tpu.memory_space<vmem>>, vector<1x8x128xf32>
    %73 = vector.shape_cast %72 : vector<1x8x128xf32> to vector<8x128xf32>
    %74 = vector.shape_cast %71 : vector<8x128xf32> to vector<1x8x128xf32>
    tpu.vector_store %arg10[%c1_54, %c0_55, %c0_56], %74 {strides = array<i32>} : memref<2x8x128xf32, #tpu.memory_space<vmem>>, vector<1x8x128xf32>,
    %75 = arith.index_cast %c1_i32 : i32 to index
    %c0_57 = arith.constant 0 : index
    %c0_58 = arith.constant 0 : index
    %76 = vector.load %arg9[%75, %c0_57, %c0_58] : memref<4x8x128xf32, #tpu.memory_space<vmem>>, vector<1x8x128xf32>
    %77 = vector.shape_cast %76 : vector<1x8x128xf32> to vector<8x128xf32>
    %78 = vector.shape_cast %71 : vector<8x128xf32> to vector<1x8x128xf32>
    tpu.vector_store %arg9[%75, %c0_57, %c0_58], %78 {strides = array<i32>} : memref<4x8x128xf32, #tpu.memory_space<vmem>>, vector<1x8x128xf32>,
    %c2_i32 = arith.constant 2 : i32
    %79 = arith.index_cast %c2_i32 : i32 to index
    %c0_59 = arith.constant 0 : index
    %c0_60 = arith.constant 0 : index
    %80 = vector.load %arg1[%79, %c0_59, %c0_60] : memref<4x8x128xf32, #tpu.memory_space<vmem>>, vector<1x8x128xf32>
    %81 = vector.shape_cast %80 : vector<1x8x128xf32> to vector<8x128xf32>
    %82 = arith.truncf %81 : vector<8x128xf32> to vector<8x128xbf16>
    %c0_61 = arith.constant 0 : index
    %c0_62 = arith.constant 0 : index
    %c0_63 = arith.constant 0 : index
    %83 = vector.load %arg10[%c0_61, %c0_62, %c0_63] : memref<2x8x128xf32, #tpu.memory_space<vmem>>, vector<1x8x128xf32>
    %84 = vector.shape_cast %83 : vector<1x8x128xf32> to vector<8x128xf32>
    %c0_64 = arith.constant 0 : index
    %c0_65 = arith.constant 0 : index
    %85 = vector.load %arg3[%c0_64, %c0_65] : memref<128x128xbf16, #tpu.memory_space<vmem>>, vector<128x128xbf16>
    %cst_66 = arith.constant dense<0.000000e+00> : vector<8x128xf32>
    %86 = tpu.matmul %82, %85, %cst_66 {dimension_numbers = #tpu.dot_dimension_numbers<[1], [0], [0], [1], [0, 0, 1, 1], [], []>} : vector<8x128xbf16>, vector<128x128xbf16>, vector<8x128xf32> -> vector<8x128xf32>
    %87 = arith.truncf %84 : vector<8x128xf32> to vector<8x128xbf16>
    %c0_67 = arith.constant 0 : index
    %c0_68 = arith.constant 0 : index
    %88 = vector.load %arg4[%c0_67, %c0_68] : memref<128x128xbf16, #tpu.memory_space<vmem>>, vector<128x128xbf16>
    %cst_69 = arith.constant dense<0.000000e+00> : vector<8x128xf32>
    %89 = tpu.matmul %87, %88, %cst_69 {dimension_numbers = #tpu.dot_dimension_numbers<[1], [0], [0], [1], [0, 0, 1, 1], [], []>} : vector<8x128xbf16>, vector<128x128xbf16>, vector<8x128xf32> -> vector<8x128xf32>
    %90 = arith.addf %86, %89 : vector<8x128xf32>
    %91 = arith.addf %90, %5 : vector<8x128xf32>
    %92 = math.tanh %91 : vector<8x128xf32>
    %c0_70 = arith.constant 0 : index
    %c0_71 = arith.constant 0 : index
    %c0_72 = arith.constant 0 : index
    %93 = vector.load %arg10[%c0_70, %c0_71, %c0_72] : memref<2x8x128xf32, #tpu.memory_space<vmem>>, vector<1x8x128xf32>
    %94 = vector.shape_cast %93 : vector<1x8x128xf32> to vector<8x128xf32>
    %95 = vector.shape_cast %92 : vector<8x128xf32> to vector<1x8x128xf32>
    tpu.vector_store %arg10[%c0_70, %c0_71, %c0_72], %95 {strides = array<i32>} : memref<2x8x128xf32, #tpu.memory_space<vmem>>, vector<1x8x128xf32>,
    %96 = arith.truncf %92 : vector<8x128xf32> to vector<8x128xbf16>
    %c1_73 = arith.constant 1 : index
    %c0_74 = arith.constant 0 : index
    %c0_75 = arith.constant 0 : index
    %97 = vector.load %arg10[%c1_73, %c0_74, %c0_75] : memref<2x8x128xf32, #tpu.memory_space<vmem>>, vector<1x8x128xf32>
    %98 = vector.shape_cast %97 : vector<1x8x128xf32> to vector<8x128xf32>
    %c0_76 = arith.constant 0 : index
    %c0_77 = arith.constant 0 : index
    %99 = vector.load %arg6[%c0_76, %c0_77] : memref<128x128xbf16, #tpu.memory_space<vmem>>, vector<128x128xbf16>
    %cst_78 = arith.constant dense<0.000000e+00> : vector<8x128xf32>
    %100 = tpu.matmul %96, %99, %cst_78 {dimension_numbers = #tpu.dot_dimension_numbers<[1], [0], [0], [1], [0, 0, 1, 1], [], []>} : vector<8x128xbf16>, vector<128x128xbf16>, vector<8x128xf32> -> vector<8x128xf32>
    %101 = arith.truncf %98 : vector<8x128xf32> to vector<8x128xbf16>
    %c0_79 = arith.constant 0 : index
    %c0_80 = arith.constant 0 : index
    %102 = vector.load %arg7[%c0_79, %c0_80] : memref<128x128xbf16, #tpu.memory_space<vmem>>, vector<128x128xbf16>
    %cst_81 = arith.constant dense<0.000000e+00> : vector<8x128xf32>
    %103 = tpu.matmul %101, %102, %cst_81 {dimension_numbers = #tpu.dot_dimension_numbers<[1], [0], [0], [1], [0, 0, 1, 1], [], []>} : vector<8x128xbf16>, vector<128x128xbf16>, vector<8x128xf32> -> vector<8x128xf32>
    %104 = arith.addf %100, %103 : vector<8x128xf32>
    %105 = arith.addf %104, %8 : vector<8x128xf32>
    %106 = math.tanh %105 : vector<8x128xf32>
    %c1_82 = arith.constant 1 : index
    %c0_83 = arith.constant 0 : index
    %c0_84 = arith.constant 0 : index
    %107 = vector.load %arg10[%c1_82, %c0_83, %c0_84] : memref<2x8x128xf32, #tpu.memory_space<vmem>>, vector<1x8x128xf32>
    %108 = vector.shape_cast %107 : vector<1x8x128xf32> to vector<8x128xf32>
    %109 = vector.shape_cast %106 : vector<8x128xf32> to vector<1x8x128xf32>
    tpu.vector_store %arg10[%c1_82, %c0_83, %c0_84], %109 {strides = array<i32>} : memref<2x8x128xf32, #tpu.memory_space<vmem>>, vector<1x8x128xf32>,
    %110 = arith.index_cast %c2_i32 : i32 to index
    %c0_85 = arith.constant 0 : index
    %c0_86 = arith.constant 0 : index
    %111 = vector.load %arg9[%110, %c0_85, %c0_86] : memref<4x8x128xf32, #tpu.memory_space<vmem>>, vector<1x8x128xf32>
    %112 = vector.shape_cast %111 : vector<1x8x128xf32> to vector<8x128xf32>
    %113 = vector.shape_cast %106 : vector<8x128xf32> to vector<1x8x128xf32>
    tpu.vector_store %arg9[%110, %c0_85, %c0_86], %113 {strides = array<i32>} : memref<4x8x128xf32, #tpu.memory_space<vmem>>, vector<1x8x128xf32>,
    %c3_i32 = arith.constant 3 : i32
    %114 = arith.index_cast %c3_i32 : i32 to index
    %c0_87 = arith.constant 0 : index
    %c0_88 = arith.constant 0 : index
    %115 = vector.load %arg1[%114, %c0_87, %c0_88] : memref<4x8x128xf32, #tpu.memory_space<vmem>>, vector<1x8x128xf32>
    %116 = vector.shape_cast %115 : vector<1x8x128xf32> to vector<8x128xf32>
    %117 = arith.truncf %116 : vector<8x128xf32> to vector<8x128xbf16>
    %c0_89 = arith.constant 0 : index
    %c0_90 = arith.constant 0 : index
    %c0_91 = arith.constant 0 : index
    %118 = vector.load %arg10[%c0_89, %c0_90, %c0_91] : memref<2x8x128xf32, #tpu.memory_space<vmem>>, vector<1x8x128xf32>
    %119 = vector.shape_cast %118 : vector<1x8x128xf32> to vector<8x128xf32>
    %c0_92 = arith.constant 0 : index
    %c0_93 = arith.constant 0 : index
    %120 = vector.load %arg3[%c0_92, %c0_93] : memref<128x128xbf16, #tpu.memory_space<vmem>>, vector<128x128xbf16>
    %cst_94 = arith.constant dense<0.000000e+00> : vector<8x128xf32>
    %121 = tpu.matmul %117, %120, %cst_94 {dimension_numbers = #tpu.dot_dimension_numbers<[1], [0], [0], [1], [0, 0, 1, 1], [], []>} : vector<8x128xbf16>, vector<128x128xbf16>, vector<8x128xf32> -> vector<8x128xf32>
    %122 = arith.truncf %119 : vector<8x128xf32> to vector<8x128xbf16>
    %c0_95 = arith.constant 0 : index
    %c0_96 = arith.constant 0 : index
    %123 = vector.load %arg4[%c0_95, %c0_96] : memref<128x128xbf16, #tpu.memory_space<vmem>>, vector<128x128xbf16>
    %cst_97 = arith.constant dense<0.000000e+00> : vector<8x128xf32>
    %124 = tpu.matmul %122, %123, %cst_97 {dimension_numbers = #tpu.dot_dimension_numbers<[1], [0], [0], [1], [0, 0, 1, 1], [], []>} : vector<8x128xbf16>, vector<128x128xbf16>, vector<8x128xf32> -> vector<8x128xf32>
    %125 = arith.addf %121, %124 : vector<8x128xf32>
    %126 = arith.addf %125, %5 : vector<8x128xf32>
    %127 = math.tanh %126 : vector<8x128xf32>
    %c0_98 = arith.constant 0 : index
    %c0_99 = arith.constant 0 : index
    %c0_100 = arith.constant 0 : index
    %128 = vector.load %arg10[%c0_98, %c0_99, %c0_100] : memref<2x8x128xf32, #tpu.memory_space<vmem>>, vector<1x8x128xf32>
    %129 = vector.shape_cast %128 : vector<1x8x128xf32> to vector<8x128xf32>
    %130 = vector.shape_cast %127 : vector<8x128xf32> to vector<1x8x128xf32>
    tpu.vector_store %arg10[%c0_98, %c0_99, %c0_100], %130 {strides = array<i32>} : memref<2x8x128xf32, #tpu.memory_space<vmem>>, vector<1x8x128xf32>,
    %131 = arith.truncf %127 : vector<8x128xf32> to vector<8x128xbf16>
    %c1_101 = arith.constant 1 : index
    %c0_102 = arith.constant 0 : index
    %c0_103 = arith.constant 0 : index
    %132 = vector.load %arg10[%c1_101, %c0_102, %c0_103] : memref<2x8x128xf32, #tpu.memory_space<vmem>>, vector<1x8x128xf32>
    %133 = vector.shape_cast %132 : vector<1x8x128xf32> to vector<8x128xf32>
    %c0_104 = arith.constant 0 : index
    %c0_105 = arith.constant 0 : index
    %134 = vector.load %arg6[%c0_104, %c0_105] : memref<128x128xbf16, #tpu.memory_space<vmem>>, vector<128x128xbf16>
    %cst_106 = arith.constant dense<0.000000e+00> : vector<8x128xf32>
    %135 = tpu.matmul %131, %134, %cst_106 {dimension_numbers = #tpu.dot_dimension_numbers<[1], [0], [0], [1], [0, 0, 1, 1], [], []>} : vector<8x128xbf16>, vector<128x128xbf16>, vector<8x128xf32> -> vector<8x128xf32>
    %136 = arith.truncf %133 : vector<8x128xf32> to vector<8x128xbf16>
    %c0_107 = arith.constant 0 : index
    %c0_108 = arith.constant 0 : index
    %137 = vector.load %arg7[%c0_107, %c0_108] : memref<128x128xbf16, #tpu.memory_space<vmem>>, vector<128x128xbf16>
    %cst_109 = arith.constant dense<0.000000e+00> : vector<8x128xf32>
    %138 = tpu.matmul %136, %137, %cst_109 {dimension_numbers = #tpu.dot_dimension_numbers<[1], [0], [0], [1], [0, 0, 1, 1], [], []>} : vector<8x128xbf16>, vector<128x128xbf16>, vector<8x128xf32> -> vector<8x128xf32>
    %139 = arith.addf %135, %138 : vector<8x128xf32>
    %140 = arith.addf %139, %8 : vector<8x128xf32>
    %141 = math.tanh %140 : vector<8x128xf32>
    %c1_110 = arith.constant 1 : index
    %c0_111 = arith.constant 0 : index
    %c0_112 = arith.constant 0 : index
    %142 = vector.load %arg10[%c1_110, %c0_111, %c0_112] : memref<2x8x128xf32, #tpu.memory_space<vmem>>, vector<1x8x128xf32>
    %143 = vector.shape_cast %142 : vector<1x8x128xf32> to vector<8x128xf32>
    %144 = vector.shape_cast %141 : vector<8x128xf32> to vector<1x8x128xf32>
    tpu.vector_store %arg10[%c1_110, %c0_111, %c0_112], %144 {strides = array<i32>} : memref<2x8x128xf32, #tpu.memory_space<vmem>>, vector<1x8x128xf32>,
    %145 = arith.index_cast %c3_i32 : i32 to index
    %c0_113 = arith.constant 0 : index
    %c0_114 = arith.constant 0 : index
    %146 = vector.load %arg9[%145, %c0_113, %c0_114] : memref<4x8x128xf32, #tpu.memory_space<vmem>>, vector<1x8x128xf32>
    %147 = vector.shape_cast %146 : vector<1x8x128xf32> to vector<8x128xf32>
    %148 = vector.shape_cast %141 : vector<8x128xf32> to vector<1x8x128xf32>
    tpu.vector_store %arg9[%145, %c0_113, %c0_114], %148 {strides = array<i32>} : memref<4x8x128xf32, #tpu.memory_space<vmem>>, vector<1x8x128xf32>,
    %c4_i32 = arith.constant 4 : i32
    return
  }
  func.func @transform_0(%arg0: i32) -> (i32, i32, i32) {
    %c0_i32 = arith.constant 0 : i32
    %c0_i32_0 = arith.constant 0 : i32
    %c0_i32_1 = arith.constant 0 : i32
    return %arg0, %c0_i32, %c0_i32_0 : i32, i32, i32
  }
  func.func @transform_1(%arg0: i32) -> (i32, i32, i32) {
    %c0_i32 = arith.constant 0 : i32
    %c0_i32_0 = arith.constant 0 : i32
    %c0_i32_1 = arith.constant 0 : i32
    %c0_i32_2 = arith.constant 0 : i32
    return %c0_i32, %c0_i32_0, %c0_i32_1 : i32, i32, i32
  }
  func.func @transform_2(%arg0: i32) -> (i32, i32) {
    %c0_i32 = arith.constant 0 : i32
    %c0_i32_0 = arith.constant 0 : i32
    %c0_i32_1 = arith.constant 0 : i32
    return %c0_i32, %c0_i32_0 : i32, i32
  }
  func.func @transform_3(%arg0: i32) -> (i32, i32) {
    %c0_i32 = arith.constant 0 : i32
    %c0_i32_0 = arith.constant 0 : i32
    %c0_i32_1 = arith.constant 0 : i32
    return %c0_i32, %c0_i32_0 : i32, i32
  }
  func.func @transform_4(%arg0: i32) -> (i32, i32) {
    %c0_i32 = arith.constant 0 : i32
    %c0_i32_0 = arith.constant 0 : i32
    %c0_i32_1 = arith.constant 0 : i32
    return %c0_i32, %c0_i32_0 : i32, i32
  }
  func.func @transform_5(%arg0: i32) -> (i32, i32) {
    %c0_i32 = arith.constant 0 : i32
    %c0_i32_0 = arith.constant 0 : i32
    %c0_i32_1 = arith.constant 0 : i32
    return %c0_i32, %c0_i32_0 : i32, i32
  }
  func.func @transform_6(%arg0: i32) -> (i32, i32) {
    %c0_i32 = arith.constant 0 : i32
    %c0_i32_0 = arith.constant 0 : i32
    %c0_i32_1 = arith.constant 0 : i32
    return %c0_i32, %c0_i32_0 : i32, i32
  }
  func.func @transform_7(%arg0: i32) -> (i32, i32) {
    %c0_i32 = arith.constant 0 : i32
    %c0_i32_0 = arith.constant 0 : i32
    %c0_i32_1 = arith.constant 0 : i32
    return %c0_i32, %c0_i32_0 : i32, i32
  }
  func.func @transform_8(%arg0: i32) -> (i32, i32, i32) {
    %c0_i32 = arith.constant 0 : i32
    %c0_i32_0 = arith.constant 0 : i32
    %c0_i32_1 = arith.constant 0 : i32
    return %arg0, %c0_i32, %c0_i32_0 : i32, i32, i32
  }
  func.func @transform_9(%arg0: i32) -> (i32, i32, i32) {
    %c0_i32 = arith.constant 0 : i32
    %c0_i32_0 = arith.constant 0 : i32
    %c0_i32_1 = arith.constant 0 : i32
    %c0_i32_2 = arith.constant 0 : i32
    return %c0_i32, %c0_i32_0, %c0_i32_1 : i32, i32, i32
  }
}

</mosaic_0001>

<llo_original>
// kernel: tpu_custom_call.1
$region0: #{tpu_custom_call.1}
  #allocation0 [shape = 'u32[]', space=smem, size = 0x4, offset = 0x4, fixed_abs, tag = 'smem constant byte address 0x4 - core index']
  #allocation1 [shape = 'u32[144,128]{1,0:T(1,128)}', space=vmem, size = 0x12000, scoped, tag = 'internal scratch']
  %s0 = inlined_call_operand.hbm [shape: f32[8,8,128], index: 0, kind: input, shape index: {}]
  %s1 = inlined_call_operand.hbm [shape: f32[2,8,128], index: 1, kind: input, shape index: {}]
  %s2 = inlined_call_operand.hbm [shape: bf16[128,128], index: 2, kind: input, shape index: {}]
  %s3 = inlined_call_operand.hbm [shape: bf16[128,128], index: 3, kind: input, shape index: {}]
  %s4 = inlined_call_operand.vmem [shape: f32[1,128], index: 4, kind: input, shape index: {}]
  %s5 = inlined_call_operand.hbm [shape: bf16[128,128], index: 5, kind: input, shape index: {}]
  %s6 = inlined_call_operand.hbm [shape: bf16[128,128], index: 6, kind: input, shape index: {}]
  %s7 = inlined_call_operand.vmem [shape: f32[1,128], index: 7, kind: input, shape index: {}]
  %s8 = inlined_call_operand.hbm [shape: f32[8,8,128], index: 8, kind: output, shape index: {0}]
  %s9 = inlined_call_operand.hbm [shape: f32[2,8,128], index: 9, kind: output, shape index: {1}]
  %10 = xla_tuple %s8, %s9
  %s11 = sld [smem:[#allocation0]]
  $region101: #{tpu_custom_call.1} parent=0
    _
  %s13 = ssub.s32 1, %s11
  %s14 = scalar_select 0, %s13, %s11
  $region1: #{tpu_custom_call.1} parent=0
    #allocation2 [shape = 'u8[32768]{0}', space=vmem, size = 0x8000, scoped, tag = 'input window, operand 0']
    #allocation3 [shape = 's32[2]{0}', space=sflag, size = 0x8, scoped, tag = 'scoped memory for tpu_custom_call.1']
    #allocation4 [shape = 's32[2]{0}', space=sflag, size = 0x8, scoped, tag = 'scoped memory for tpu_custom_call.1']
    #allocation5 [shape = 'u8[8192]{0}', space=vmem, size = 0x2000, scoped, tag = 'input window, operand 1, single buffered']
    #allocation6 [shape = 's32[1]{0}', space=sflag, size = 0x4, scoped, tag = 'scoped memory for tpu_custom_call.1']
    #allocation7 [shape = 'u8[32768]{0}', space=vmem, size = 0x8000, scoped, tag = 'input window, operand 2, single buffered']
    #allocation8 [shape = 'u8[32768]{0}', space=vmem, size = 0x8000, scoped, tag = 'input window, operand 3, single buffered']
    #allocation9 [shape = 's32[1]{0}', space=sflag, size = 0x4, scoped, tag = 'scoped memory for tpu_custom_call.1']
    #allocation10 [shape = 'u8[32768]{0}', space=vmem, size = 0x8000, scoped, tag = 'input window, operand 5, single buffered']
    #allocation11 [shape = 'u8[32768]{0}', space=vmem, size = 0x8000, scoped, tag = 'input window, operand 6, single buffered']
    #allocation12 [shape = 's32[1]{0}', space=sflag, size = 0x4, scoped, tag = 'scoped memory for tpu_custom_call.1']
    #allocation13 [shape = 'u8[32768]{0}', space=vmem, size = 0x8000, scoped, tag = 'output window, operand 0']
    #allocation14 [shape = 'u8[8192]{0}', space=vmem, size = 0x2000, scoped, tag = 'output window, operand 1, single buffered']
    #allocation15 [shape = 's32[1]{0}', space=sflag, size = 0x4, scoped, tag = 'scoped memory for tpu_custom_call.1']
    %15 = vsyncpa [#allocation3], 0
    %s16 = scalar_lea.sflag [#allocation3], 1
    %17 = vsyncpa %s16, 0
    %18 = vsyncpa [#allocation6], 0
    %19 = vsyncpa [#allocation9], 0
    %20 = vsyncpa [#allocation12], 0
    %21 = vsyncpa [#allocation4], 0
    %s22 = scalar_lea.sflag [#allocation4], 1
    %23 = vsyncpa %s22, 0
    %24 = vsyncpa [#allocation15], 0
    loop: start=0, step=1, limit=4
    $region2: #{tpu_custom_call.1} parent=1 // loop_pre_header
      _
    $region3: #{tpu_custom_call.1} parent=1 // loop_header
      %s26 = sphi 0, %s30
      %p27 = scmp.ge.s32.totalorder %s26, 4
      %s36 = sphi 0, %s38
      %s39 = sphi 0, %s36
      %s40 = sphi 0, %s39
      %s56 = sphi 0, %s40
      %s60 = sphi 0, %s60
      %s62 = sphi 0, %s60
      %s63 = sphi 0, %s62
      %s77 = sphi 0, %s63
      %s81 = sphi 0, %s81
      %s83 = sphi 0, %s81
      %s84 = sphi 0, %s83
      %s98 = sphi 0, %s84
      %s102 = sphi 0, %s102
      %s104 = sphi 0, %s102
      %s105 = sphi 0, %s104
      %s119 = sphi 0, %s105
      %s123 = sphi 0, %s123
      %s125 = sphi 0, %s123
      %s126 = sphi 0, %s125
      %s140 = sphi 0, %s126
      %s144 = sphi 0, %s144
      %s146 = sphi 0, %s144
      %s147 = sphi 0, %s146
      %s161 = sphi 0, %s147
      %s165 = sphi 0, %s165
      %s167 = sphi 0, %s165
      %s168 = sphi 0, %s167
      %s182 = sphi 0, %s168
      %s186 = sphi 0, %s186
      %s188 = sphi 0, %s186
      %s189 = sphi 0, %s188
      %s203 = sphi 0, %s189
      %s209 = sphi 0, %s211
      %s212 = sphi 0, %s209
      %s213 = sphi 0, %s212
      %s229 = sphi 0, %s213
      %s233 = sphi 0, %s233
      %s235 = sphi 0, %s233
      %s236 = sphi 0, %s235
      %s250 = sphi 0, %s236
    $region4: #{tpu_custom_call.1} parent=1 // loop_header_branch
      %29 = sbr.rel (%p27) target = $region8
    $region5: #{tpu_custom_call.1} parent=1 // loop_body
      %s31 = ssub.s32 %s26, 1
      %s32 = ssub.s32 %s26, 2
      %s33 = sadd.s32 %s26, 1
      %s34 = ssub.s32 %s26, %s33
      %p35 = scmp.eq.s32.totalorder %s34, 0
      %s37 = sadd.s32 %s36, 1
      %s38 = scalar_select %p35, %s36, %s37
      %p41 = pneg %p35
      %p42 = scmp.eq.s32.totalorder %s26, 1
      %p43 = por %p41, %p42
      %p44 = scmp.ne.s32.totalorder %s36, %s39
      %p45 = scmp.eq.s32.totalorder %s26, 0
      %p46 = por %p44, %p45
      %p47 = scmp.ne.s32.totalorder %s36, %s39
      %p48 = scmp.eq.s32.totalorder %s31, 1
      %p49 = por %p47, %p48
      %p50 = scmp.ne.s32.totalorder %s39, %s40
      %p51 = scmp.eq.s32.totalorder %s31, 0
      %p52 = por %p50, %p51
      %p53 = scmp.ne.s32.totalorder %s39, %s40
      %p54 = scmp.eq.s32.totalorder %s32, 1
      %p55 = por %p53, %p54
      %p57 = scmp.ne.s32.totalorder %s40, %s56
      %p58 = scmp.eq.s32.totalorder %s32, 0
      %p59 = por %p57, %p58
      %s61 = sadd.s32 %s60, 1
      %p64 = scmp.eq.s32.totalorder %s26, 1
      %p65 = scmp.ne.s32.totalorder %s60, %s62
      %p66 = scmp.eq.s32.totalorder %s26, 0
      %p67 = por %p65, %p66
      %p68 = scmp.ne.s32.totalorder %s60, %s62
      %p69 = scmp.eq.s32.totalorder %s31, 1
      %p70 = por %p68, %p69
      %p71 = scmp.ne.s32.totalorder %s62, %s63
      %p72 = scmp.eq.s32.totalorder %s31, 0
      %p73 = por %p71, %p72
      %p74 = scmp.ne.s32.totalorder %s62, %s63
      %p75 = scmp.eq.s32.totalorder %s32, 1
      %p76 = por %p74, %p75
      %p78 = scmp.ne.s32.totalorder %s63, %s77
      %p79 = scmp.eq.s32.totalorder %s32, 0
      %p80 = por %p78, %p79
      %s82 = sadd.s32 %s81, 1
      %p85 = scmp.eq.s32.totalorder %s26, 1
      %p86 = scmp.ne.s32.totalorder %s81, %s83
      %p87 = scmp.eq.s32.totalorder %s26, 0
      %p88 = por %p86, %p87
      %p89 = scmp.ne.s32.totalorder %s81, %s83
      %p90 = scmp.eq.s32.totalorder %s31, 1
      %p91 = por %p89, %p90
      %p92 = scmp.ne.s32.totalorder %s83, %s84
      %p93 = scmp.eq.s32.totalorder %s31, 0
      %p94 = por %p92, %p93
      %p95 = scmp.ne.s32.totalorder %s83, %s84
      %p96 = scmp.eq.s32.totalorder %s32, 1
      %p97 = por %p95, %p96
      %p99 = scmp.ne.s32.totalorder %s84, %s98
      %p100 = scmp.eq.s32.totalorder %s32, 0
      %p101 = por %p99, %p100
      %s103 = sadd.s32 %s102, 1
      %p106 = scmp.eq.s32.totalorder %s26, 1
      %p107 = scmp.ne.s32.totalorder %s102, %s104
      %p108 = scmp.eq.s32.totalorder %s26, 0
      %p109 = por %p107, %p108
      %p110 = scmp.ne.s32.totalorder %s102, %s104
      %p111 = scmp.eq.s32.totalorder %s31, 1
      %p112 = por %p110, %p111
      %p113 = scmp.ne.s32.totalorder %s104, %s105
      %p114 = scmp.eq.s32.totalorder %s31, 0
      %p115 = por %p113, %p114
      %p116 = scmp.ne.s32.totalorder %s104, %s105
      %p117 = scmp.eq.s32.totalorder %s32, 1
      %p118 = por %p116, %p117
      %p120 = scmp.ne.s32.totalorder %s105, %s119
      %p121 = scmp.eq.s32.totalorder %s32, 0
      %p122 = por %p120, %p121
      %s124 = sadd.s32 %s123, 1
      %p127 = scmp.eq.s32.totalorder %s26, 1
      %p128 = scmp.ne.s32.totalorder %s123, %s125
      %p129 = scmp.eq.s32.totalorder %s26, 0
      %p130 = por %p128, %p129
      %p131 = scmp.ne.s32.totalorder %s123, %s125
      %p132 = scmp.eq.s32.totalorder %s31, 1
      %p133 = por %p131, %p132
      %p134 = scmp.ne.s32.totalorder %s125, %s126
      %p135 = scmp.eq.s32.totalorder %s31, 0
      %p136 = por %p134, %p135
      %p137 = scmp.ne.s32.totalorder %s125, %s126
      %p138 = scmp.eq.s32.totalorder %s32, 1
      %p139 = por %p137, %p138
      %p141 = scmp.ne.s32.totalorder %s126, %s140
      %p142 = scmp.eq.s32.totalorder %s32, 0
      %p143 = por %p141, %p142
      %s145 = sadd.s32 %s144, 1
      %p148 = scmp.eq.s32.totalorder %s26, 1
      %p149 = scmp.ne.s32.totalorder %s144, %s146
      %p150 = scmp.eq.s32.totalorder %s26, 0
      %p151 = por %p149, %p150
      %p152 = scmp.ne.s32.totalorder %s144, %s146
      %p153 = scmp.eq.s32.totalorder %s31, 1
      %p154 = por %p152, %p153
      %p155 = scmp.ne.s32.totalorder %s146, %s147
      %p156 = scmp.eq.s32.totalorder %s31, 0
      %p157 = por %p155, %p156
      %p158 = scmp.ne.s32.totalorder %s146, %s147
      %p159 = scmp.eq.s32.totalorder %s32, 1
      %p160 = por %p158, %p159
      %p162 = scmp.ne.s32.totalorder %s147, %s161
      %p163 = scmp.eq.s32.totalorder %s32, 0
      %p164 = por %p162, %p163
      %s166 = sadd.s32 %s165, 1
      %p169 = scmp.eq.s32.totalorder %s26, 1
      %p170 = scmp.ne.s32.totalorder %s165, %s167
      %p171 = scmp.eq.s32.totalorder %s26, 0
      %p172 = por %p170, %p171
      %p173 = scmp.ne.s32.totalorder %s165, %s167
      %p174 = scmp.eq.s32.totalorder %s31, 1
      %p175 = por %p173, %p174
      %p176 = scmp.ne.s32.totalorder %s167, %s168
      %p177 = scmp.eq.s32.totalorder %s31, 0
      %p178 = por %p176, %p177
      %p179 = scmp.ne.s32.totalorder %s167, %s168
      %p180 = scmp.eq.s32.totalorder %s32, 1
      %p181 = por %p179, %p180
      %p183 = scmp.ne.s32.totalorder %s168, %s182
      %p184 = scmp.eq.s32.totalorder %s32, 0
      %p185 = por %p183, %p184
      %s187 = sadd.s32 %s186, 1
      %p190 = scmp.eq.s32.totalorder %s26, 1
      %p191 = scmp.ne.s32.totalorder %s186, %s188
      %p192 = scmp.eq.s32.totalorder %s26, 0
      %p193 = por %p191, %p192
      %p194 = scmp.ne.s32.totalorder %s186, %s188
      %p195 = scmp.eq.s32.totalorder %s31, 1
      %p196 = por %p194, %p195
      %p197 = scmp.ne.s32.totalorder %s188, %s189
      %p198 = scmp.eq.s32.totalorder %s31, 0
      %p199 = por %p197, %p198
      %p200 = scmp.ne.s32.totalorder %s188, %s189
      %p201 = scmp.eq.s32.totalorder %s32, 1
      %p202 = por %p200, %p201
      %p204 = scmp.ne.s32.totalorder %s189, %s203
      %p205 = scmp.eq.s32.totalorder %s32, 0
      %p206 = por %p204, %p205
      %s207 = ssub.s32 %s26, %s33
      %p208 = scmp.eq.s32.totalorder %s207, 0
      %s210 = sadd.s32 %s209, 1
      %s211 = scalar_select %p208, %s209, %s210
      %p214 = pneg %p208
      %p215 = scmp.eq.s32.totalorder %s26, 1
      %p216 = por %p214, %p215
      %p217 = scmp.ne.s32.totalorder %s209, %s212
      %p218 = scmp.eq.s32.totalorder %s26, 0
      %p219 = por %p217, %p218
      %p220 = scmp.ne.s32.totalorder %s209, %s212
      %p221 = scmp.eq.s32.totalorder %s31, 1
      %p222 = por %p220, %p221
      %p223 = scmp.ne.s32.totalorder %s212, %s213
      %p224 = scmp.eq.s32.totalorder %s31, 0
      %p225 = por %p223, %p224
      %p226 = scmp.ne.s32.totalorder %s212, %s213
      %p227 = scmp.eq.s32.totalorder %s32, 1
      %p228 = por %p226, %p227
      %p230 = scmp.ne.s32.totalorder %s213, %s229
      %p231 = scmp.eq.s32.totalorder %s32, 0
      %p232 = por %p230, %p231
      %s234 = sadd.s32 %s233, 1
      %p237 = scmp.eq.s32.totalorder %s26, 1
      %p238 = scmp.ne.s32.totalorder %s233, %s235
      %p239 = scmp.eq.s32.totalorder %s26, 0
      %p240 = por %p238, %p239
      %p241 = scmp.ne.s32.totalorder %s233, %s235
      %p242 = scmp.eq.s32.totalorder %s31, 1
      %p243 = por %p241, %p242
      %p244 = scmp.ne.s32.totalorder %s235, %s236
      %p245 = scmp.eq.s32.totalorder %s31, 0
      %p246 = por %p244, %p245
      %p247 = scmp.ne.s32.totalorder %s235, %s236
      %p248 = scmp.eq.s32.totalorder %s32, 1
      %p249 = por %p247, %p248
      %p251 = scmp.ne.s32.totalorder %s236, %s250
      %p252 = scmp.eq.s32.totalorder %s32, 0
      %p253 = por %p251, %p252
      %p254 = scmp.le.s32.totalorder 1, %s26
      %p255 = scmp.lt.s32.totalorder %s26, 3
      %p256 = pnand %p254, %p255
      %p257 = pneg %p256
      // Predicated region
      $region9: #{tpu_custom_call.1} parent=5 // pred_check
        _
      $region10: #{tpu_custom_call.1} parent=5 // pred_check_branch
        %259 = sbr.rel (%p256) target = $region12
      $region11: #{tpu_custom_call.1} parent=5 // pred_region
        %s260 = ssub.s32 %s26, 1
        // Predicated region
        $region13: #{tpu_custom_call.1} parent=11 // pred_check
          %p261 = pneg %p73
        $region14: #{tpu_custom_call.1} parent=11 // pred_check_branch
          %263 = sbr.rel (%p261) target = $region16
        $region15: #{tpu_custom_call.1} parent=11 // pred_region
          %s265 = ssub.s32 256, 256
          %266 = vsyncadd [#allocation6], %s265
          %s267 = sshll.u32 [#allocation5], 4
          %s268 = int_to_ptr.vmem [resolvable:$true] %s267
          %273 = dma.hbm_to_vmem [thread:$0]  %s1, 256, %s268, [#allocation6], 128, 128, 8
        $region16: #{tpu_custom_call.1} parent=11 // pred_fallthru
          _
        // Predicated region
        $region17: #{tpu_custom_call.1} parent=11 // pred_check
          %p274 = pneg %p94
        $region18: #{tpu_custom_call.1} parent=11 // pred_check_branch
          %276 = sbr.rel (%p274) target = $region20
        $region19: #{tpu_custom_call.1} parent=11 // pred_region
          %s278 = ssub.s32 1024, 1024
          %279 = vsyncadd [#allocation6], %s278
          %s280 = sshll.u32 [#allocation7], 4
          %s281 = int_to_ptr.vmem [resolvable:$true] %s280
          %286 = dma.hbm_to_vmem [thread:$0]  %s2, 1024, %s281, [#allocation6], 64, 64, 4
        $region20: #{tpu_custom_call.1} parent=11 // pred_fallthru
          _
        // Predicated region
        $region21: #{tpu_custom_call.1} parent=11 // pred_check
          %p287 = pneg %p115
        $region22: #{tpu_custom_call.1} parent=11 // pred_check_branch
          %289 = sbr.rel (%p287) target = $region24
        $region23: #{tpu_custom_call.1} parent=11 // pred_region
          %s291 = ssub.s32 1024, 1024
          %292 = vsyncadd [#allocation9], %s291
          %s293 = sshll.u32 [#allocation8], 4
          %s294 = int_to_ptr.vmem [resolvable:$true] %s293
          %299 = dma.hbm_to_vmem [thread:$0]  %s3, 1024, %s294, [#allocation9], 64, 64, 4
        $region24: #{tpu_custom_call.1} parent=11 // pred_fallthru
          _
        // Predicated region
        $region25: #{tpu_custom_call.1} parent=11 // pred_check
          %p300 = pneg %p136
        $region26: #{tpu_custom_call.1} parent=11 // pred_check_branch
          %302 = sbr.rel (%p300) target = $region28
        $region27: #{tpu_custom_call.1} parent=11 // pred_region
          _
        $region28: #{tpu_custom_call.1} parent=11 // pred_fallthru
          _
        // Predicated region
        $region29: #{tpu_custom_call.1} parent=11 // pred_check
          %p303 = pneg %p157
        $region30: #{tpu_custom_call.1} parent=11 // pred_check_branch
          %305 = sbr.rel (%p303) target = $region32
        $region31: #{tpu_custom_call.1} parent=11 // pred_region
          %s307 = ssub.s32 1024, 1024
          %308 = vsyncadd [#allocation9], %s307
          %s309 = sshll.u32 [#allocation10], 4
          %s310 = int_to_ptr.vmem [resolvable:$true] %s309
          %315 = dma.hbm_to_vmem [thread:$0]  %s5, 1024, %s310, [#allocation9], 64, 64, 4
        $region32: #{tpu_custom_call.1} parent=11 // pred_fallthru
          _
        // Predicated region
        $region33: #{tpu_custom_call.1} parent=11 // pred_check
          %p316 = pneg %p178
        $region34: #{tpu_custom_call.1} parent=11 // pred_check_branch
          %318 = sbr.rel (%p316) target = $region36
        $region35: #{tpu_custom_call.1} parent=11 // pred_region
          %s320 = ssub.s32 1024, 1024
          %321 = vsyncadd [#allocation12], %s320
          %s322 = sshll.u32 [#allocation11], 4
          %s323 = int_to_ptr.vmem [resolvable:$true] %s322
          %328 = dma.hbm_to_vmem [thread:$0]  %s6, 1024, %s323, [#allocation12], 64, 64, 4
        $region36: #{tpu_custom_call.1} parent=11 // pred_fallthru
          _
        // Predicated region
        $region37: #{tpu_custom_call.1} parent=11 // pred_check
          %p329 = pneg %p199
        $region38: #{tpu_custom_call.1} parent=11 // pred_check_branch
          %331 = sbr.rel (%p329) target = $region40
        $region39: #{tpu_custom_call.1} parent=11 // pred_region
          _
        $region40: #{tpu_custom_call.1} parent=11 // pred_fallthru
          _
      $region12: #{tpu_custom_call.1} parent=5 // pred_fallthru
        _
      %p332 = scmp.lt.s32.totalorder %s26, 2
      // Predicated region
      $region41: #{tpu_custom_call.1} parent=5 // pred_check
        %p333 = pneg %p332
      $region42: #{tpu_custom_call.1} parent=5 // pred_check_branch
        %335 = sbr.rel (%p333) target = $region44
      $region43: #{tpu_custom_call.1} parent=5 // pred_region
        // Predicated region
        $region45: #{tpu_custom_call.1} parent=43 // pred_check
          %p336 = pneg %p46
        $region46: #{tpu_custom_call.1} parent=43 // pred_check_branch
          %338 = sbr.rel (%p336) target = $region48
        $region47: #{tpu_custom_call.1} parent=43 // pred_region
          %s339 = sand.u32 %s36, 1
          %s340 = scalar_lea.sflag [#allocation3], %s339
          %s341 = sand.u32 %s36, 1
          %s342 = smul.addr %s341, 32
          %s343 = scalar_lea.vmem [#allocation2], %s342
          %s344 = smul.u32 4, %s26
          %s346 = ssub.s32 512, 512
          %347 = vsyncadd %s340, %s346
          %s348 = smul.addr %s344, 128
          %s349 = scalar_lea.hbm %s0, %s348
          %s350 = sshll.u32 %s343, 4
          %s351 = int_to_ptr.vmem [resolvable:$true] %s350
          %356 = dma.hbm_to_vmem [thread:$0]  %s349, 512, %s351, %s340, 128, 128, 8
        $region48: #{tpu_custom_call.1} parent=43 // pred_fallthru
          _
      $region44: #{tpu_custom_call.1} parent=5 // pred_fallthru
        _
      %p357 = scmp.le.s32.totalorder 1, %s26
      %p358 = scmp.lt.s32.totalorder %s26, 3
      %p359 = pnand %p357, %p358
      %p360 = pneg %p359
      // Predicated region
      $region49: #{tpu_custom_call.1} parent=5 // pred_check
        _
      $region50: #{tpu_custom_call.1} parent=5 // pred_check_branch
        %362 = sbr.rel (%p359) target = $region52
      $region51: #{tpu_custom_call.1} parent=5 // pred_region
        %s363 = ssub.s32 %s26, 1
        %s364 = sand.u32 %s39, 1
        %s365 = scalar_lea.sflag [#allocation3], %s364
        %s366 = sand.u32 %s39, 1
        %s367 = smul.addr %s366, 32
        %s368 = scalar_lea.vmem [#allocation2], %s367
        // Predicated region
        $region53: #{tpu_custom_call.1} parent=51 // pred_check
          %p369 = pneg %p52
        $region54: #{tpu_custom_call.1} parent=51 // pred_check_branch
          %371 = sbr.rel (%p369) target = $region56
        $region55: #{tpu_custom_call.1} parent=51 // pred_region
          %372 = dma.done %s365, 512
        $region56: #{tpu_custom_call.1} parent=51 // pred_fallthru
          _
        // Predicated region
        $region57: #{tpu_custom_call.1} parent=51 // pred_check
          %p373 = pneg %p73
        $region58: #{tpu_custom_call.1} parent=51 // pred_check_branch
          %375 = sbr.rel (%p373) target = $region60
        $region59: #{tpu_custom_call.1} parent=51 // pred_region
          %376 = dma.done [#allocation6], 256
        $region60: #{tpu_custom_call.1} parent=51 // pred_fallthru
          _
        // Predicated region
        $region61: #{tpu_custom_call.1} parent=51 // pred_check
          %p377 = pneg %p94
        $region62: #{tpu_custom_call.1} parent=51 // pred_check_branch
          %379 = sbr.rel (%p377) target = $region64
        $region63: #{tpu_custom_call.1} parent=51 // pred_region
          %380 = dma.done [#allocation6], 1024
        $region64: #{tpu_custom_call.1} parent=51 // pred_fallthru
          _
        // Predicated region
        $region65: #{tpu_custom_call.1} parent=51 // pred_check
          %p381 = pneg %p115
        $region66: #{tpu_custom_call.1} parent=51 // pred_check_branch
          %383 = sbr.rel (%p381) target = $region68
        $region67: #{tpu_custom_call.1} parent=51 // pred_region
          %384 = dma.done [#allocation9], 1024
        $region68: #{tpu_custom_call.1} parent=51 // pred_fallthru
          _
        // Predicated region
        $region69: #{tpu_custom_call.1} parent=51 // pred_check
          %p385 = pneg %p157
        $region70: #{tpu_custom_call.1} parent=51 // pred_check_branch
          %387 = sbr.rel (%p385) target = $region72
        $region71: #{tpu_custom_call.1} parent=51 // pred_region
          %388 = dma.done [#allocation9], 1024
        $region72: #{tpu_custom_call.1} parent=51 // pred_fallthru
          _
        // Predicated region
        $region73: #{tpu_custom_call.1} parent=51 // pred_check
          %p389 = pneg %p178
        $region74: #{tpu_custom_call.1} parent=51 // pred_check_branch
          %391 = sbr.rel (%p389) target = $region76
        $region75: #{tpu_custom_call.1} parent=51 // pred_region
          %392 = dma.done [#allocation12], 1024
        $region76: #{tpu_custom_call.1} parent=51 // pred_fallthru
          _
        %s393 = sand.u32 %s39, 1
        %s394 = scalar_lea.sflag [#allocation3], %s393
        %s395 = sand.u32 %s39, 1
        %s396 = smul.addr %s395, 32
        %s397 = scalar_lea.vmem [#allocation2], %s396
        %p398 = pneg %p52
        %p399 = pneg %p49
        %p400 = pneg %p73
        %p401 = pneg %p70
        %p402 = pneg %p94
        %p403 = pneg %p91
        %p404 = pneg %p115
        %p405 = pneg %p112
        %p406 = pneg %p136
        %p407 = pneg %p133
        %p408 = pneg %p157
        %p409 = pneg %p154
        %p410 = pneg %p178
        %p411 = pneg %p175
        %p412 = pneg %p199
        %p413 = pneg %p196
        %p414 = pneg %p225
        %p415 = pneg %p222
        %s416 = sand.u32 %s212, 1
        %s417 = scalar_lea.sflag [#allocation4], %s416
        %s418 = sand.u32 %s212, 1
        %s419 = smul.addr %s418, 32
        %s420 = scalar_lea.vmem [#allocation13], %s419
        %p421 = pneg %p246
        %p422 = pneg %p243
        %s423 = smul.u32 4, %s31
        %s424 = smul.u32 4, %s31
        %p426 = scmp.eq.s32.totalorder %s31, 0
        // Predicated region
        $region77: #{tpu_custom_call.1} parent=51 // pred_check
          %p427 = pneg %p426
        $region78: #{tpu_custom_call.1} parent=51 // pred_check_branch
          %429 = sbr.rel (%p427) target = $region80
        $region79: #{tpu_custom_call.1} parent=51 // pred_region
          %v430 = vld [vmem:[#allocation5] sm:$0xff]
          %v431 = vld [vmem:[#allocation5 + $0x8] sm:$0xff]
          %432 = vst [vmem:[#allocation14] sm:$0xff] %v430
          %433 = vst [vmem:[#allocation14 + $0x8] sm:$0xff] %v431
        $region80: #{tpu_custom_call.1} parent=51 // pred_fallthru
          _
        %v434 = vld [vmem:[%s4] sm:$0x1]
        %v436 = vlaneseq
        %v437 = vshrl.u32 %v436, 7
        %v438 = vsub.s32 0, %v437
        %v439 = vrot.slane %v434, %v438
        %v441 = vld [vmem:[%s7] sm:$0x1]
        %v443 = vlaneseq
        %v444 = vshrl.u32 %v443, 7
        %v445 = vsub.s32 0, %v444
        %v446 = vrot.slane %v441, %v445
        %v448 = vld [vmem:[%s368] sm:$0xff]
        %v449 = vpack.c.bf16 %v448, %v448
        %v450 = vld [vmem:[#allocation14] sm:$0xff]
        %v451 = vld [vmem:[#allocation7] sm:$0xf]
        %v452 = vld [vmem:[#allocation7 + $0x4] sm:$0xf]
        %v453 = vld [vmem:[#allocation7 + $0x8] sm:$0xf]
        %v454 = vld [vmem:[#allocation7 + $0xc] sm:$0xf]
        %v455 = vld [vmem:[#allocation7 + $0x10] sm:$0xf]
        %v456 = vld [vmem:[#allocation7 + $0x14] sm:$0xf]
        %v457 = vld [vmem:[#allocation7 + $0x18] sm:$0xf]
        %v458 = vld [vmem:[#allocation7 + $0x1c] sm:$0xf]
        %v459 = vld [vmem:[#allocation7 + $0x20] sm:$0xf]
        %v460 = vld [vmem:[#allocation7 + $0x24] sm:$0xf]
        %v461 = vld [vmem:[#allocation7 + $0x28] sm:$0xf]
        %v462 = vld [vmem:[#allocation7 + $0x2c] sm:$0xf]
        %v463 = vld [vmem:[#allocation7 + $0x30] sm:$0xf]
        %v464 = vld [vmem:[#allocation7 + $0x34] sm:$0xf]
        %v465 = vld [vmem:[#allocation7 + $0x38] sm:$0xf]
        %v466 = vld [vmem:[#allocation7 + $0x3c] sm:$0xf]
        %v467 = vpack.c.bf16 %v450, %v450
        %v468 = vld [vmem:[#allocation8] sm:$0xf]
        %v469 = vld [vmem:[#allocation8 + $0x4] sm:$0xf]
        %v470 = vld [vmem:[#allocation8 + $0x8] sm:$0xf]
        %v471 = vld [vmem:[#allocation8 + $0xc] sm:$0xf]
        %v472 = vld [vmem:[#allocation8 + $0x10] sm:$0xf]
        %v473 = vld [vmem:[#allocation8 + $0x14] sm:$0xf]
        %v474 = vld [vmem:[#allocation8 + $0x18] sm:$0xf]
        %v475 = vld [vmem:[#allocation8 + $0x1c] sm:$0xf]
        %v476 = vld [vmem:[#allocation8 + $0x20] sm:$0xf]
        %v477 = vld [vmem:[#allocation8 + $0x24] sm:$0xf]
        %v478 = vld [vmem:[#allocation8 + $0x28] sm:$0xf]
        %v479 = vld [vmem:[#allocation8 + $0x2c] sm:$0xf]
        %v480 = vld [vmem:[#allocation8 + $0x30] sm:$0xf]
        %v481 = vld [vmem:[#allocation8 + $0x34] sm:$0xf]
        %v482 = vld [vmem:[#allocation8 + $0x38] sm:$0xf]
        %v483 = vld [vmem:[#allocation8 + $0x3c] sm:$0xf]
        %v500 = vunpack.c.l.b16 %v468
        %v501 = vunpack.c.l.b16 %v469
        %v502 = vunpack.c.l.b16 %v470
        %v503 = vunpack.c.l.b16 %v471
        %v504 = vunpack.c.l.b16 %v472
        %v505 = vunpack.c.l.b16 %v473
        %v506 = vunpack.c.l.b16 %v474
        %v507 = vunpack.c.l.b16 %v475
        %v508 = vunpack.c.l.b16 %v476
        %v509 = vunpack.c.l.b16 %v477
        %v510 = vunpack.c.l.b16 %v478
        %v511 = vunpack.c.l.b16 %v479
        %v512 = vunpack.c.l.b16 %v480
        %v513 = vunpack.c.l.b16 %v481
        %v514 = vunpack.c.l.b16 %v482
        %v515 = vunpack.c.l.b16 %v483
        %v516 = vpack.c.b16 %v501, %v500
        %v517 = vpack.c.b16 %v503, %v502
        %v518 = vpack.c.b16 %v505, %v504
        %v519 = vpack.c.b16 %v507, %v506
        %v520 = vpack.c.b16 %v509, %v508
        %v521 = vpack.c.b16 %v511, %v510
        %v522 = vpack.c.b16 %v513, %v512
        %v523 = vpack.c.b16 %v515, %v514
        %532 = vmatprep.subr.bf16.mxu0 0
        %533 = vmatpush1.bf16.msra.mxu0 %v516
        %534 = vmatprep.subr.bf16.mxu0 0
        %535 = vmatpush1.bf16.msra.mxu0 %v517
        %536 = vmatprep.subr.bf16.mxu0 0
        %537 = vmatpush1.bf16.msra.mxu0 %v518
        %538 = vmatprep.subr.bf16.mxu0 0
        %539 = vmatpush1.bf16.msra.mxu0 %v519
        %540 = vmatprep.subr.bf16.mxu0 0
        %541 = vmatpush1.bf16.msra.mxu0 %v520
        %542 = vmatprep.subr.bf16.mxu0 0
        %543 = vmatpush1.bf16.msra.mxu0 %v521
        %544 = vmatprep.subr.bf16.mxu0 0
        %545 = vmatpush1.bf16.msra.mxu0 %v522
        %546 = vmatprep.subr.bf16.mxu0 0
        %547 = vmatpush1.bf16.msra.mxu0 %v523
        %548 = vmatprep.subr.bf16.mxu0 0
        %549 = vmatpush1.bf16.msra.mxu0 0
        %550 = vmatprep.subr.bf16.mxu0 0
        %551 = vmatpush1.bf16.msra.mxu0 0
        %552 = vmatprep.subr.bf16.mxu0 0
        %553 = vmatpush1.bf16.msra.mxu0 0
        %554 = vmatprep.subr.bf16.mxu0 0
        %555 = vmatpush1.bf16.msra.mxu0 0
        %556 = vmatprep.subr.bf16.mxu0 0
        %557 = vmatpush1.bf16.msra.mxu0 0
        %558 = vmatprep.subr.bf16.mxu0 0
        %559 = vmatpush1.bf16.msra.mxu0 0
        %560 = vmatprep.subr.bf16.mxu0 0
        %561 = vmatpush1.bf16.msra.mxu0 0
        %562 = vmatprep.subr.bf16.mxu0 0
        %563 = vmatpush1.bf16.msra.mxu0 0
        %564 = vmatprep.mubr.bf16.mxu0 0
        %565 = vmatmul.mubr.bf16.gmra.mrb[0].mxu0 %v467
        %v566 = vpop.f32.mrb[0].mxu0
        %v567 = vadd.f32 0.0, %v566
        %v568 = vpop.f32.mrb[0].mxu0
        %v569 = vpop.f32.mrb[0].mxu0
        %v570 = vpop.f32.mrb[0].mxu0
        %571 = vdwg.mxu0
        %v588 = vunpack.c.l.b16 %v451
        %v589 = vunpack.c.l.b16 %v452
        %v590 = vunpack.c.l.b16 %v453
        %v591 = vunpack.c.l.b16 %v454
        %v592 = vunpack.c.l.b16 %v455
        %v593 = vunpack.c.l.b16 %v456
        %v594 = vunpack.c.l.b16 %v457
        %v595 = vunpack.c.l.b16 %v458
        %v596 = vunpack.c.l.b16 %v459
        %v597 = vunpack.c.l.b16 %v460
        %v598 = vunpack.c.l.b16 %v461
        %v599 = vunpack.c.l.b16 %v462
        %v600 = vunpack.c.l.b16 %v463
        %v601 = vunpack.c.l.b16 %v464
        %v602 = vunpack.c.l.b16 %v465
        %v603 = vunpack.c.l.b16 %v466
        %v604 = vpack.c.b16 %v589, %v588
        %v605 = vpack.c.b16 %v591, %v590
        %v606 = vpack.c.b16 %v593, %v592
        %v607 = vpack.c.b16 %v595, %v594
        %v608 = vpack.c.b16 %v597, %v596
        %v609 = vpack.c.b16 %v599, %v598
        %v610 = vpack.c.b16 %v601, %v600
        %v611 = vpack.c.b16 %v603, %v602
        %620 = vmatprep.subr.bf16.mxu0 0
        %621 = vmatpush1.bf16.msra.mxu0 %v604
        %622 = vmatprep.subr.bf16.mxu0 0
        %623 = vmatpush1.bf16.msra.mxu0 %v605
        %624 = vmatprep.subr.bf16.mxu0 0
        %625 = vmatpush1.bf16.msra.mxu0 %v606
        %626 = vmatprep.subr.bf16.mxu0 0
        %627 = vmatpush1.bf16.msra.mxu0 %v607
        %628 = vmatprep.subr.bf16.mxu0 0
        %629 = vmatpush1.bf16.msra.mxu0 %v608
        %630 = vmatprep.subr.bf16.mxu0 0
        %631 = vmatpush1.bf16.msra.mxu0 %v609
        %632 = vmatprep.subr.bf16.mxu0 0
        %633 = vmatpush1.bf16.msra.mxu0 %v610
        %634 = vmatprep.subr.bf16.mxu0 0
        %635 = vmatpush1.bf16.msra.mxu0 %v611
        %636 = vmatprep.subr.bf16.mxu0 0
        %637 = vmatpush1.bf16.msra.mxu0 0
        %638 = vmatprep.subr.bf16.mxu0 0
        %639 = vmatpush1.bf16.msra.mxu0 0
        %640 = vmatprep.subr.bf16.mxu0 0
        %641 = vmatpush1.bf16.msra.mxu0 0
        %642 = vmatprep.subr.bf16.mxu0 0
        %643 = vmatpush1.bf16.msra.mxu0 0
        %644 = vmatprep.subr.bf16.mxu0 0
        %645 = vmatpush1.bf16.msra.mxu0 0
        %646 = vmatprep.subr.bf16.mxu0 0
        %647 = vmatpush1.bf16.msra.mxu0 0
        %648 = vmatprep.subr.bf16.mxu0 0
        %649 = vmatpush1.bf16.msra.mxu0 0
        %650 = vmatprep.subr.bf16.mxu0 0
        %651 = vmatpush1.bf16.msra.mxu0 0
        %652 = vmatprep.mubr.bf16.mxu0 0
        %653 = vmatmul.mubr.bf16.gmra.mrb[0].mxu0 %v449
        %v654 = vpop.f32.mrb[0].mxu0
        %v655 = vadd.f32 %v567, %v654
        %v656 = vpop.f32.mrb[0].mxu0
        %v657 = vpop.f32.mrb[0].mxu0
        %v658 = vpop.f32.mrb[0].mxu0
        %659 = vdwg.mxu0
        %v660 = vadd.f32 %v655, %v439
        %v661 = vtanh.pop %v660
        %662 = vst [vmem:[#allocation14] sm:$0xff] %v661
        %v663 = vpack.c.bf16 %v661, %v661
        %s664 = scalar_lea.vmem [#allocation14], 8
        %v665 = vld [vmem:[%s664] sm:$0xff]
        %v666 = vld [vmem:[#allocation10] sm:$0xf]
        %v667 = vld [vmem:[#allocation10 + $0x4] sm:$0xf]
        %v668 = vld [vmem:[#allocation10 + $0x8] sm:$0xf]
        %v669 = vld [vmem:[#allocation10 + $0xc] sm:$0xf]
        %v670 = vld [vmem:[#allocation10 + $0x10] sm:$0xf]
        %v671 = vld [vmem:[#allocation10 + $0x14] sm:$0xf]
        %v672 = vld [vmem:[#allocation10 + $0x18] sm:$0xf]
        %v673 = vld [vmem:[#allocation10 + $0x1c] sm:$0xf]
        %v674 = vld [vmem:[#allocation10 + $0x20] sm:$0xf]
        %v675 = vld [vmem:[#allocation10 + $0x24] sm:$0xf]
        %v676 = vld [vmem:[#allocation10 + $0x28] sm:$0xf]
        %v677 = vld [vmem:[#allocation10 + $0x2c] sm:$0xf]
        %v678 = vld [vmem:[#allocation10 + $0x30] sm:$0xf]
        %v679 = vld [vmem:[#allocation10 + $0x34] sm:$0xf]
        %v680 = vld [vmem:[#allocation10 + $0x38] sm:$0xf]
        %v681 = vld [vmem:[#allocation10 + $0x3c] sm:$0xf]
        %v682 = vpack.c.bf16 %v665, %v665
        %v683 = vld [vmem:[#allocation11] sm:$0xf]
        %v684 = vld [vmem:[#allocation11 + $0x4] sm:$0xf]
        %v685 = vld [vmem:[#allocation11 + $0x8] sm:$0xf]
        %v686 = vld [vmem:[#allocation11 + $0xc] sm:$0xf]
        %v687 = vld [vmem:[#allocation11 + $0x10] sm:$0xf]
        %v688 = vld [vmem:[#allocation11 + $0x14] sm:$0xf]
        %v689 = vld [vmem:[#allocation11 + $0x18] sm:$0xf]
        %v690 = vld [vmem:[#allocation11 + $0x1c] sm:$0xf]
        %v691 = vld [vmem:[#allocation11 + $0x20] sm:$0xf]
        %v692 = vld [vmem:[#allocation11 + $0x24] sm:$0xf]
        %v693 = vld [vmem:[#allocation11 + $0x28] sm:$0xf]
        %v694 = vld [vmem:[#allocation11 + $0x2c] sm:$0xf]
        %v695 = vld [vmem:[#allocation11 + $0x30] sm:$0xf]
        %v696 = vld [vmem:[#allocation11 + $0x34] sm:$0xf]
        %v697 = vld [vmem:[#allocation11 + $0x38] sm:$0xf]
        %v698 = vld [vmem:[#allocation11 + $0x3c] sm:$0xf]
        %v715 = vunpack.c.l.b16 %v683
        %v716 = vunpack.c.l.b16 %v684
        %v717 = vunpack.c.l.b16 %v685
        %v718 = vunpack.c.l.b16 %v686
        %v719 = vunpack.c.l.b16 %v687
        %v720 = vunpack.c.l.b16 %v688
        %v721 = vunpack.c.l.b16 %v689
        %v722 = vunpack.c.l.b16 %v690
        %v723 = vunpack.c.l.b16 %v691
        %v724 = vunpack.c.l.b16 %v692
        %v725 = vunpack.c.l.b16 %v693
        %v726 = vunpack.c.l.b16 %v694
        %v727 = vunpack.c.l.b16 %v695
        %v728 = vunpack.c.l.b16 %v696
        %v729 = vunpack.c.l.b16 %v697
        %v730 = vunpack.c.l.b16 %v698
        %v731 = vpack.c.b16 %v716, %v715
        %v732 = vpack.c.b16 %v718, %v717
        %v733 = vpack.c.b16 %v720, %v719
        %v734 = vpack.c.b16 %v722, %v721
        %v735 = vpack.c.b16 %v724, %v723
        %v736 = vpack.c.b16 %v726, %v725
        %v737 = vpack.c.b16 %v728, %v727
        %v738 = vpack.c.b16 %v730, %v729
        %747 = vmatprep.subr.bf16.mxu0 0
        %748 = vmatpush1.bf16.msra.mxu0 %v731
        %749 = vmatprep.subr.bf16.mxu0 0
        %750 = vmatpush1.bf16.msra.mxu0 %v732
        %751 = vmatprep.subr.bf16.mxu0 0
        %752 = vmatpush1.bf16.msra.mxu0 %v733
        %753 = vmatprep.subr.bf16.mxu0 0
        %754 = vmatpush1.bf16.msra.mxu0 %v734
        %755 = vmatprep.subr.bf16.mxu0 0
        %756 = vmatpush1.bf16.msra.mxu0 %v735
        %757 = vmatprep.subr.bf16.mxu0 0
        %758 = vmatpush1.bf16.msra.mxu0 %v736
        %759 = vmatprep.subr.bf16.mxu0 0
        %760 = vmatpush1.bf16.msra.mxu0 %v737
        %761 = vmatprep.subr.bf16.mxu0 0
        %762 = vmatpush1.bf16.msra.mxu0 %v738
        %763 = vmatprep.subr.bf16.mxu0 0
        %764 = vmatpush1.bf16.msra.mxu0 0
        %765 = vmatprep.subr.bf16.mxu0 0
        %766 = vmatpush1.bf16.msra.mxu0 0
        %767 = vmatprep.subr.bf16.mxu0 0
        %768 = vmatpush1.bf16.msra.mxu0 0
        %769 = vmatprep.subr.bf16.mxu0 0
        %770 = vmatpush1.bf16.msra.mxu0 0
        %771 = vmatprep.subr.bf16.mxu0 0
        %772 = vmatpush1.bf16.msra.mxu0 0
        %773 = vmatprep.subr.bf16.mxu0 0
        %774 = vmatpush1.bf16.msra.mxu0 0
        %775 = vmatprep.subr.bf16.mxu0 0
        %776 = vmatpush1.bf16.msra.mxu0 0
        %777 = vmatprep.subr.bf16.mxu0 0
        %778 = vmatpush1.bf16.msra.mxu0 0
        %779 = vmatprep.mubr.bf16.mxu0 0
        %780 = vmatmul.mubr.bf16.gmra.mrb[0].mxu0 %v682
        %v781 = vpop.f32.mrb[0].mxu0
        %v782 = vadd.f32 0.0, %v781
        %v783 = vpop.f32.mrb[0].mxu0
        %v784 = vpop.f32.mrb[0].mxu0
        %v785 = vpop.f32.mrb[0].mxu0
        %786 = vdwg.mxu0
        %v803 = vunpack.c.l.b16 %v666
        %v804 = vunpack.c.l.b16 %v667
        %v805 = vunpack.c.l.b16 %v668
        %v806 = vunpack.c.l.b16 %v669
        %v807 = vunpack.c.l.b16 %v670
        %v808 = vunpack.c.l.b16 %v671
        %v809 = vunpack.c.l.b16 %v672
        %v810 = vunpack.c.l.b16 %v673
        %v811 = vunpack.c.l.b16 %v674
        %v812 = vunpack.c.l.b16 %v675
        %v813 = vunpack.c.l.b16 %v676
        %v814 = vunpack.c.l.b16 %v677
        %v815 = vunpack.c.l.b16 %v678
        %v816 = vunpack.c.l.b16 %v679
        %v817 = vunpack.c.l.b16 %v680
        %v818 = vunpack.c.l.b16 %v681
        %v819 = vpack.c.b16 %v804, %v803
        %v820 = vpack.c.b16 %v806, %v805
        %v821 = vpack.c.b16 %v808, %v807
        %v822 = vpack.c.b16 %v810, %v809
        %v823 = vpack.c.b16 %v812, %v811
        %v824 = vpack.c.b16 %v814, %v813
        %v825 = vpack.c.b16 %v816, %v815
        %v826 = vpack.c.b16 %v818, %v817
        %835 = vmatprep.subr.bf16.mxu0 0
        %836 = vmatpush1.bf16.msra.mxu0 %v819
        %837 = vmatprep.subr.bf16.mxu0 0
        %838 = vmatpush1.bf16.msra.mxu0 %v820
        %839 = vmatprep.subr.bf16.mxu0 0
        %840 = vmatpush1.bf16.msra.mxu0 %v821
        %841 = vmatprep.subr.bf16.mxu0 0
        %842 = vmatpush1.bf16.msra.mxu0 %v822
        %843 = vmatprep.subr.bf16.mxu0 0
        %844 = vmatpush1.bf16.msra.mxu0 %v823
        %845 = vmatprep.subr.bf16.mxu0 0
        %846 = vmatpush1.bf16.msra.mxu0 %v824
        %847 = vmatprep.subr.bf16.mxu0 0
        %848 = vmatpush1.bf16.msra.mxu0 %v825
        %849 = vmatprep.subr.bf16.mxu0 0
        %850 = vmatpush1.bf16.msra.mxu0 %v826
        %851 = vmatprep.subr.bf16.mxu0 0
        %852 = vmatpush1.bf16.msra.mxu0 0
        %853 = vmatprep.subr.bf16.mxu0 0
        %854 = vmatpush1.bf16.msra.mxu0 0
        %855 = vmatprep.subr.bf16.mxu0 0
        %856 = vmatpush1.bf16.msra.mxu0 0
        %857 = vmatprep.subr.bf16.mxu0 0
        %858 = vmatpush1.bf16.msra.mxu0 0
        %859 = vmatprep.subr.bf16.mxu0 0
        %860 = vmatpush1.bf16.msra.mxu0 0
        %861 = vmatprep.subr.bf16.mxu0 0
        %862 = vmatpush1.bf16.msra.mxu0 0
        %863 = vmatprep.subr.bf16.mxu0 0
        %864 = vmatpush1.bf16.msra.mxu0 0
        %865 = vmatprep.subr.bf16.mxu0 0
        %866 = vmatpush1.bf16.msra.mxu0 0
        %867 = vmatprep.mubr.bf16.mxu0 0
        %868 = vmatmul.mubr.bf16.gmra.mrb[0].mxu0 %v663
        %v869 = vpop.f32.mrb[0].mxu0
        %v870 = vadd.f32 %v782, %v869
        %v871 = vpop.f32.mrb[0].mxu0
        %v872 = vpop.f32.mrb[0].mxu0
        %v873 = vpop.f32.mrb[0].mxu0
        %874 = vdwg.mxu0
        %v875 = vadd.f32 %v870, %v446
        %v876 = vtanh.pop %v875
        %877 = vst [vmem:[%s664] sm:$0xff] %v876
        %878 = vst [vmem:[%s420] sm:$0xff] %v876
        %s879 = scalar_lea.vmem %s368, 8 [#allocation2]
        %v880 = vld [vmem:[%s879] sm:$0xff]
        %v881 = vpack.c.bf16 %v880, %v880
        %v882 = vld [vmem:[#allocation14] sm:$0xff]
        %v883 = vld [vmem:[#allocation7] sm:$0xf]
        %v884 = vld [vmem:[#allocation7 + $0x4] sm:$0xf]
        %v885 = vld [vmem:[#allocation7 + $0x8] sm:$0xf]
        %v886 = vld [vmem:[#allocation7 + $0xc] sm:$0xf]
        %v887 = vld [vmem:[#allocation7 + $0x10] sm:$0xf]
        %v888 = vld [vmem:[#allocation7 + $0x14] sm:$0xf]
        %v889 = vld [vmem:[#allocation7 + $0x18] sm:$0xf]
        %v890 = vld [vmem:[#allocation7 + $0x1c] sm:$0xf]
        %v891 = vld [vmem:[#allocation7 + $0x20] sm:$0xf]
        %v892 = vld [vmem:[#allocation7 + $0x24] sm:$0xf]
        %v893 = vld [vmem:[#allocation7 + $0x28] sm:$0xf]
        %v894 = vld [vmem:[#allocation7 + $0x2c] sm:$0xf]
        %v895 = vld [vmem:[#allocation7 + $0x30] sm:$0xf]
        %v896 = vld [vmem:[#allocation7 + $0x34] sm:$0xf]
        %v897 = vld [vmem:[#allocation7 + $0x38] sm:$0xf]
        %v898 = vld [vmem:[#allocation7 + $0x3c] sm:$0xf]
        %v899 = vpack.c.bf16 %v882, %v882
        %v900 = vld [vmem:[#allocation8] sm:$0xf]
        %v901 = vld [vmem:[#allocation8 + $0x4] sm:$0xf]
        %v902 = vld [vmem:[#allocation8 + $0x8] sm:$0xf]
        %v903 = vld [vmem:[#allocation8 + $0xc] sm:$0xf]
        %v904 = vld [vmem:[#allocation8 + $0x10] sm:$0xf]
        %v905 = vld [vmem:[#allocation8 + $0x14] sm:$0xf]
        %v906 = vld [vmem:[#allocation8 + $0x18] sm:$0xf]
        %v907 = vld [vmem:[#allocation8 + $0x1c] sm:$0xf]
        %v908 = vld [vmem:[#allocation8 + $0x20] sm:$0xf]
        %v909 = vld [vmem:[#allocation8 + $0x24] sm:$0xf]
        %v910 = vld [vmem:[#allocation8 + $0x28] sm:$0xf]
        %v911 = vld [vmem:[#allocation8 + $0x2c] sm:$0xf]
        %v912 = vld [vmem:[#allocation8 + $0x30] sm:$0xf]
        %v913 = vld [vmem:[#allocation8 + $0x34] sm:$0xf]
        %v914 = vld [vmem:[#allocation8 + $0x38] sm:$0xf]
        %v915 = vld [vmem:[#allocation8 + $0x3c] sm:$0xf]
        %v932 = vunpack.c.l.b16 %v900
        %v933 = vunpack.c.l.b16 %v901
        %v934 = vunpack.c.l.b16 %v902
        %v935 = vunpack.c.l.b16 %v903
        %v936 = vunpack.c.l.b16 %v904
        %v937 = vunpack.c.l.b16 %v905
        %v938 = vunpack.c.l.b16 %v906
        %v939 = vunpack.c.l.b16 %v907
        %v940 = vunpack.c.l.b16 %v908
        %v941 = vunpack.c.l.b16 %v909
        %v942 = vunpack.c.l.b16 %v910
        %v943 = vunpack.c.l.b16 %v911
        %v944 = vunpack.c.l.b16 %v912
        %v945 = vunpack.c.l.b16 %v913
        %v946 = vunpack.c.l.b16 %v914
        %v947 = vunpack.c.l.b16 %v915
        %v948 = vpack.c.b16 %v933, %v932
        %v949 = vpack.c.b16 %v935, %v934
        %v950 = vpack.c.b16 %v937, %v936
        %v951 = vpack.c.b16 %v939, %v938
        %v952 = vpack.c.b16 %v941, %v940
        %v953 = vpack.c.b16 %v943, %v942
        %v954 = vpack.c.b16 %v945, %v944
        %v955 = vpack.c.b16 %v947, %v946
        %964 = vmatprep.subr.bf16.mxu0 0
        %965 = vmatpush1.bf16.msra.mxu0 %v948
        %966 = vmatprep.subr.bf16.mxu0 0
        %967 = vmatpush1.bf16.msra.mxu0 %v949
        %968 = vmatprep.subr.bf16.mxu0 0
        %969 = vmatpush1.bf16.msra.mxu0 %v950
        %970 = vmatprep.subr.bf16.mxu0 0
        %971 = vmatpush1.bf16.msra.mxu0 %v951
        %972 = vmatprep.subr.bf16.mxu0 0
        %973 = vmatpush1.bf16.msra.mxu0 %v952
        %974 = vmatprep.subr.bf16.mxu0 0
        %975 = vmatpush1.bf16.msra.mxu0 %v953
        %976 = vmatprep.subr.bf16.mxu0 0
        %977 = vmatpush1.bf16.msra.mxu0 %v954
        %978 = vmatprep.subr.bf16.mxu0 0
        %979 = vmatpush1.bf16.msra.mxu0 %v955
        %980 = vmatprep.subr.bf16.mxu0 0
        %981 = vmatpush1.bf16.msra.mxu0 0
        %982 = vmatprep.subr.bf16.mxu0 0
        %983 = vmatpush1.bf16.msra.mxu0 0
        %984 = vmatprep.subr.bf16.mxu0 0
        %985 = vmatpush1.bf16.msra.mxu0 0
        %986 = vmatprep.subr.bf16.mxu0 0
        %987 = vmatpush1.bf16.msra.mxu0 0
        %988 = vmatprep.subr.bf16.mxu0 0
        %989 = vmatpush1.bf16.msra.mxu0 0
        %990 = vmatprep.subr.bf16.mxu0 0
        %991 = vmatpush1.bf16.msra.mxu0 0
        %992 = vmatprep.subr.bf16.mxu0 0
        %993 = vmatpush1.bf16.msra.mxu0 0
        %994 = vmatprep.subr.bf16.mxu0 0
        %995 = vmatpush1.bf16.msra.mxu0 0
        %996 = vmatprep.mubr.bf16.mxu0 0
        %997 = vmatmul.mubr.bf16.gmra.mrb[0].mxu0 %v899
        %v998 = vpop.f32.mrb[0].mxu0
        %v999 = vadd.f32 0.0, %v998
        %v1000 = vpop.f32.mrb[0].mxu0
        %v1001 = vpop.f32.mrb[0].mxu0
        %v1002 = vpop.f32.mrb[0].mxu0
        %1003 = vdwg.mxu0
        %v1020 = vunpack.c.l.b16 %v883
        %v1021 = vunpack.c.l.b16 %v884
        %v1022 = vunpack.c.l.b16 %v885
        %v1023 = vunpack.c.l.b16 %v886
        %v1024 = vunpack.c.l.b16 %v887
        %v1025 = vunpack.c.l.b16 %v888
        %v1026 = vunpack.c.l.b16 %v889
        %v1027 = vunpack.c.l.b16 %v890
        %v1028 = vunpack.c.l.b16 %v891
        %v1029 = vunpack.c.l.b16 %v892
        %v1030 = vunpack.c.l.b16 %v893
        %v1031 = vunpack.c.l.b16 %v894
        %v1032 = vunpack.c.l.b16 %v895
        %v1033 = vunpack.c.l.b16 %v896
        %v1034 = vunpack.c.l.b16 %v897
        %v1035 = vunpack.c.l.b16 %v898
        %v1036 = vpack.c.b16 %v1021, %v1020
        %v1037 = vpack.c.b16 %v1023, %v1022
        %v1038 = vpack.c.b16 %v1025, %v1024
        %v1039 = vpack.c.b16 %v1027, %v1026
        %v1040 = vpack.c.b16 %v1029, %v1028
        %v1041 = vpack.c.b16 %v1031, %v1030
        %v1042 = vpack.c.b16 %v1033, %v1032
        %v1043 = vpack.c.b16 %v1035, %v1034
        %1052 = vmatprep.subr.bf16.mxu0 0
        %1053 = vmatpush1.bf16.msra.mxu0 %v1036
        %1054 = vmatprep.subr.bf16.mxu0 0
        %1055 = vmatpush1.bf16.msra.mxu0 %v1037
        %1056 = vmatprep.subr.bf16.mxu0 0
        %1057 = vmatpush1.bf16.msra.mxu0 %v1038
        %1058 = vmatprep.subr.bf16.mxu0 0
        %1059 = vmatpush1.bf16.msra.mxu0 %v1039
        %1060 = vmatprep.subr.bf16.mxu0 0
        %1061 = vmatpush1.bf16.msra.mxu0 %v1040
        %1062 = vmatprep.subr.bf16.mxu0 0
        %1063 = vmatpush1.bf16.msra.mxu0 %v1041
        %1064 = vmatprep.subr.bf16.mxu0 0
        %1065 = vmatpush1.bf16.msra.mxu0 %v1042
        %1066 = vmatprep.subr.bf16.mxu0 0
        %1067 = vmatpush1.bf16.msra.mxu0 %v1043
        %1068 = vmatprep.subr.bf16.mxu0 0
        %1069 = vmatpush1.bf16.msra.mxu0 0
        %1070 = vmatprep.subr.bf16.mxu0 0
        %1071 = vmatpush1.bf16.msra.mxu0 0
        %1072 = vmatprep.subr.bf16.mxu0 0
        %1073 = vmatpush1.bf16.msra.mxu0 0
        %1074 = vmatprep.subr.bf16.mxu0 0
        %1075 = vmatpush1.bf16.msra.mxu0 0
        %1076 = vmatprep.subr.bf16.mxu0 0
        %1077 = vmatpush1.bf16.msra.mxu0 0
        %1078 = vmatprep.subr.bf16.mxu0 0
        %1079 = vmatpush1.bf16.msra.mxu0 0
        %1080 = vmatprep.subr.bf16.mxu0 0
        %1081 = vmatpush1.bf16.msra.mxu0 0
        %1082 = vmatprep.subr.bf16.mxu0 0
        %1083 = vmatpush1.bf16.msra.mxu0 0
        %1084 = vmatprep.mubr.bf16.mxu0 0
        %1085 = vmatmul.mubr.bf16.gmra.mrb[0].mxu0 %v881
        %v1086 = vpop.f32.mrb[0].mxu0
        %v1087 = vadd.f32 %v999, %v1086
        %v1088 = vpop.f32.mrb[0].mxu0
        %v1089 = vpop.f32.mrb[0].mxu0
        %v1090 = vpop.f32.mrb[0].mxu0
        %1091 = vdwg.mxu0
        %v1092 = vadd.f32 %v1087, %v439
        %v1093 = vtanh.pop %v1092
        %1094 = vst [vmem:[#allocation14] sm:$0xff] %v1093
        %v1095 = vpack.c.bf16 %v1093, %v1093
        %v1096 = vld [vmem:[%s664] sm:$0xff]
        %v1097 = vld [vmem:[#allocation10] sm:$0xf]
        %v1098 = vld [vmem:[#allocation10 + $0x4] sm:$0xf]
        %v1099 = vld [vmem:[#allocation10 + $0x8] sm:$0xf]
        %v1100 = vld [vmem:[#allocation10 + $0xc] sm:$0xf]
        %v1101 = vld [vmem:[#allocation10 + $0x10] sm:$0xf]
        %v1102 = vld [vmem:[#allocation10 + $0x14] sm:$0xf]
        %v1103 = vld [vmem:[#allocation10 + $0x18] sm:$0xf]
        %v1104 = vld [vmem:[#allocation10 + $0x1c] sm:$0xf]
        %v1105 = vld [vmem:[#allocation10 + $0x20] sm:$0xf]
        %v1106 = vld [vmem:[#allocation10 + $0x24] sm:$0xf]
        %v1107 = vld [vmem:[#allocation10 + $0x28] sm:$0xf]
        %v1108 = vld [vmem:[#allocation10 + $0x2c] sm:$0xf]
        %v1109 = vld [vmem:[#allocation10 + $0x30] sm:$0xf]
        %v1110 = vld [vmem:[#allocation10 + $0x34] sm:$0xf]
        %v1111 = vld [vmem:[#allocation10 + $0x38] sm:$0xf]
        %v1112 = vld [vmem:[#allocation10 + $0x3c] sm:$0xf]
        %v1113 = vpack.c.bf16 %v1096, %v1096
        %v1114 = vld [vmem:[#allocation11] sm:$0xf]
        %v1115 = vld [vmem:[#allocation11 + $0x4] sm:$0xf]
        %v1116 = vld [vmem:[#allocation11 + $0x8] sm:$0xf]
        %v1117 = vld [vmem:[#allocation11 + $0xc] sm:$0xf]
        %v1118 = vld [vmem:[#allocation11 + $0x10] sm:$0xf]
        %v1119 = vld [vmem:[#allocation11 + $0x14] sm:$0xf]
        %v1120 = vld [vmem:[#allocation11 + $0x18] sm:$0xf]
        %v1121 = vld [vmem:[#allocation11 + $0x1c] sm:$0xf]
        %v1122 = vld [vmem:[#allocation11 + $0x20] sm:$0xf]
        %v1123 = vld [vmem:[#allocation11 + $0x24] sm:$0xf]
        %v1124 = vld [vmem:[#allocation11 + $0x28] sm:$0xf]
        %v1125 = vld [vmem:[#allocation11 + $0x2c] sm:$0xf]
        %v1126 = vld [vmem:[#allocation11 + $0x30] sm:$0xf]
        %v1127 = vld [vmem:[#allocation11 + $0x34] sm:$0xf]
        %v1128 = vld [vmem:[#allocation11 + $0x38] sm:$0xf]
        %v1129 = vld [vmem:[#allocation11 + $0x3c] sm:$0xf]
        %v1146 = vunpack.c.l.b16 %v1114
        %v1147 = vunpack.c.l.b16 %v1115
        %v1148 = vunpack.c.l.b16 %v1116
        %v1149 = vunpack.c.l.b16 %v1117
        %v1150 = vunpack.c.l.b16 %v1118
        %v1151 = vunpack.c.l.b16 %v1119
        %v1152 = vunpack.c.l.b16 %v1120
        %v1153 = vunpack.c.l.b16 %v1121
        %v1154 = vunpack.c.l.b16 %v1122
        %v1155 = vunpack.c.l.b16 %v1123
        %v1156 = vunpack.c.l.b16 %v1124
        %v1157 = vunpack.c.l.b16 %v1125
        %v1158 = vunpack.c.l.b16 %v1126
        %v1159 = vunpack.c.l.b16 %v1127
        %v1160 = vunpack.c.l.b16 %v1128
        %v1161 = vunpack.c.l.b16 %v1129
        %v1162 = vpack.c.b16 %v1147, %v1146
        %v1163 = vpack.c.b16 %v1149, %v1148
        %v1164 = vpack.c.b16 %v1151, %v1150
        %v1165 = vpack.c.b16 %v1153, %v1152
        %v1166 = vpack.c.b16 %v1155, %v1154
        %v1167 = vpack.c.b16 %v1157, %v1156
        %v1168 = vpack.c.b16 %v1159, %v1158
        %v1169 = vpack.c.b16 %v1161, %v1160
        %1178 = vmatprep.subr.bf16.mxu0 0
        %1179 = vmatpush1.bf16.msra.mxu0 %v1162
        %1180 = vmatprep.subr.bf16.mxu0 0
        %1181 = vmatpush1.bf16.msra.mxu0 %v1163
        %1182 = vmatprep.subr.bf16.mxu0 0
        %1183 = vmatpush1.bf16.msra.mxu0 %v1164
        %1184 = vmatprep.subr.bf16.mxu0 0
        %1185 = vmatpush1.bf16.msra.mxu0 %v1165
        %1186 = vmatprep.subr.bf16.mxu0 0
        %1187 = vmatpush1.bf16.msra.mxu0 %v1166
        %1188 = vmatprep.subr.bf16.mxu0 0
        %1189 = vmatpush1.bf16.msra.mxu0 %v1167
        %1190 = vmatprep.subr.bf16.mxu0 0
        %1191 = vmatpush1.bf16.msra.mxu0 %v1168
        %1192 = vmatprep.subr.bf16.mxu0 0
        %1193 = vmatpush1.bf16.msra.mxu0 %v1169
        %1194 = vmatprep.subr.bf16.mxu0 0
        %1195 = vmatpush1.bf16.msra.mxu0 0
        %1196 = vmatprep.subr.bf16.mxu0 0
        %1197 = vmatpush1.bf16.msra.mxu0 0
        %1198 = vmatprep.subr.bf16.mxu0 0
        %1199 = vmatpush1.bf16.msra.mxu0 0
        %1200 = vmatprep.subr.bf16.mxu0 0
        %1201 = vmatpush1.bf16.msra.mxu0 0
        %1202 = vmatprep.subr.bf16.mxu0 0
        %1203 = vmatpush1.bf16.msra.mxu0 0
        %1204 = vmatprep.subr.bf16.mxu0 0
        %1205 = vmatpush1.bf16.msra.mxu0 0
        %1206 = vmatprep.subr.bf16.mxu0 0
        %1207 = vmatpush1.bf16.msra.mxu0 0
        %1208 = vmatprep.subr.bf16.mxu0 0
        %1209 = vmatpush1.bf16.msra.mxu0 0
        %1210 = vmatprep.mubr.bf16.mxu0 0
        %1211 = vmatmul.mubr.bf16.gmra.mrb[0].mxu0 %v1113
        %v1212 = vpop.f32.mrb[0].mxu0
        %v1213 = vadd.f32 0.0, %v1212
        %v1214 = vpop.f32.mrb[0].mxu0
        %v1215 = vpop.f32.mrb[0].mxu0
        %v1216 = vpop.f32.mrb[0].mxu0
        %1217 = vdwg.mxu0
        %v1234 = vunpack.c.l.b16 %v1097
        %v1235 = vunpack.c.l.b16 %v1098
        %v1236 = vunpack.c.l.b16 %v1099
        %v1237 = vunpack.c.l.b16 %v1100
        %v1238 = vunpack.c.l.b16 %v1101
        %v1239 = vunpack.c.l.b16 %v1102
        %v1240 = vunpack.c.l.b16 %v1103
        %v1241 = vunpack.c.l.b16 %v1104
        %v1242 = vunpack.c.l.b16 %v1105
        %v1243 = vunpack.c.l.b16 %v1106
        %v1244 = vunpack.c.l.b16 %v1107
        %v1245 = vunpack.c.l.b16 %v1108
        %v1246 = vunpack.c.l.b16 %v1109
        %v1247 = vunpack.c.l.b16 %v1110
        %v1248 = vunpack.c.l.b16 %v1111
        %v1249 = vunpack.c.l.b16 %v1112
        %v1250 = vpack.c.b16 %v1235, %v1234
        %v1251 = vpack.c.b16 %v1237, %v1236
        %v1252 = vpack.c.b16 %v1239, %v1238
        %v1253 = vpack.c.b16 %v1241, %v1240
        %v1254 = vpack.c.b16 %v1243, %v1242
        %v1255 = vpack.c.b16 %v1245, %v1244
        %v1256 = vpack.c.b16 %v1247, %v1246
        %v1257 = vpack.c.b16 %v1249, %v1248
        %1266 = vmatprep.subr.bf16.mxu0 0
        %1267 = vmatpush1.bf16.msra.mxu0 %v1250
        %1268 = vmatprep.subr.bf16.mxu0 0
        %1269 = vmatpush1.bf16.msra.mxu0 %v1251
        %1270 = vmatprep.subr.bf16.mxu0 0
        %1271 = vmatpush1.bf16.msra.mxu0 %v1252
        %1272 = vmatprep.subr.bf16.mxu0 0
        %1273 = vmatpush1.bf16.msra.mxu0 %v1253
        %1274 = vmatprep.subr.bf16.mxu0 0
        %1275 = vmatpush1.bf16.msra.mxu0 %v1254
        %1276 = vmatprep.subr.bf16.mxu0 0
        %1277 = vmatpush1.bf16.msra.mxu0 %v1255
        %1278 = vmatprep.subr.bf16.mxu0 0
        %1279 = vmatpush1.bf16.msra.mxu0 %v1256
        %1280 = vmatprep.subr.bf16.mxu0 0
        %1281 = vmatpush1.bf16.msra.mxu0 %v1257
        %1282 = vmatprep.subr.bf16.mxu0 0
        %1283 = vmatpush1.bf16.msra.mxu0 0
        %1284 = vmatprep.subr.bf16.mxu0 0
        %1285 = vmatpush1.bf16.msra.mxu0 0
        %1286 = vmatprep.subr.bf16.mxu0 0
        %1287 = vmatpush1.bf16.msra.mxu0 0
        %1288 = vmatprep.subr.bf16.mxu0 0
        %1289 = vmatpush1.bf16.msra.mxu0 0
        %1290 = vmatprep.subr.bf16.mxu0 0
        %1291 = vmatpush1.bf16.msra.mxu0 0
        %1292 = vmatprep.subr.bf16.mxu0 0
        %1293 = vmatpush1.bf16.msra.mxu0 0
        %1294 = vmatprep.subr.bf16.mxu0 0
        %1295 = vmatpush1.bf16.msra.mxu0 0
        %1296 = vmatprep.subr.bf16.mxu0 0
        %1297 = vmatpush1.bf16.msra.mxu0 0
        %1298 = vmatprep.mubr.bf16.mxu0 0
        %1299 = vmatmul.mubr.bf16.gmra.mrb[0].mxu0 %v1095
        %v1300 = vpop.f32.mrb[0].mxu0
        %v1301 = vadd.f32 %v1213, %v1300
        %v1302 = vpop.f32.mrb[0].mxu0
        %v1303 = vpop.f32.mrb[0].mxu0
        %v1304 = vpop.f32.mrb[0].mxu0
        %1305 = vdwg.mxu0
        %v1306 = vadd.f32 %v1301, %v446
        %v1307 = vtanh.pop %v1306
        %1308 = vst [vmem:[%s664] sm:$0xff] %v1307
        %s1309 = scalar_lea.vmem %s420, 8 [#allocation13]
        %1310 = vst [vmem:[%s1309] sm:$0xff] %v1307
        %s1311 = scalar_lea.vmem %s368, 16 [#allocation2]
        %v1312 = vld [vmem:[%s1311] sm:$0xff]
        %v1313 = vpack.c.bf16 %v1312, %v1312
        %v1314 = vld [vmem:[#allocation14] sm:$0xff]
        %v1315 = vld [vmem:[#allocation7] sm:$0xf]
        %v1316 = vld [vmem:[#allocation7 + $0x4] sm:$0xf]
        %v1317 = vld [vmem:[#allocation7 + $0x8] sm:$0xf]
        %v1318 = vld [vmem:[#allocation7 + $0xc] sm:$0xf]
        %v1319 = vld [vmem:[#allocation7 + $0x10] sm:$0xf]
        %v1320 = vld [vmem:[#allocation7 + $0x14] sm:$0xf]
        %v1321 = vld [vmem:[#allocation7 + $0x18] sm:$0xf]
        %v1322 = vld [vmem:[#allocation7 + $0x1c] sm:$0xf]
        %v1323 = vld [vmem:[#allocation7 + $0x20] sm:$0xf]
        %v1324 = vld [vmem:[#allocation7 + $0x24] sm:$0xf]
        %v1325 = vld [vmem:[#allocation7 + $0x28] sm:$0xf]
        %v1326 = vld [vmem:[#allocation7 + $0x2c] sm:$0xf]
        %v1327 = vld [vmem:[#allocation7 + $0x30] sm:$0xf]
        %v1328 = vld [vmem:[#allocation7 + $0x34] sm:$0xf]
        %v1329 = vld [vmem:[#allocation7 + $0x38] sm:$0xf]
        %v1330 = vld [vmem:[#allocation7 + $0x3c] sm:$0xf]
        %v1331 = vpack.c.bf16 %v1314, %v1314
        %v1332 = vld [vmem:[#allocation8] sm:$0xf]
        %v1333 = vld [vmem:[#allocation8 + $0x4] sm:$0xf]
        %v1334 = vld [vmem:[#allocation8 + $0x8] sm:$0xf]
        %v1335 = vld [vmem:[#allocation8 + $0xc] sm:$0xf]
        %v1336 = vld [vmem:[#allocation8 + $0x10] sm:$0xf]
        %v1337 = vld [vmem:[#allocation8 + $0x14] sm:$0xf]
        %v1338 = vld [vmem:[#allocation8 + $0x18] sm:$0xf]
        %v1339 = vld [vmem:[#allocation8 + $0x1c] sm:$0xf]
        %v1340 = vld [vmem:[#allocation8 + $0x20] sm:$0xf]
        %v1341 = vld [vmem:[#allocation8 + $0x24] sm:$0xf]
        %v1342 = vld [vmem:[#allocation8 + $0x28] sm:$0xf]
        %v1343 = vld [vmem:[#allocation8 + $0x2c] sm:$0xf]
        %v1344 = vld [vmem:[#allocation8 + $0x30] sm:$0xf]
        %v1345 = vld [vmem:[#allocation8 + $0x34] sm:$0xf]
        %v1346 = vld [vmem:[#allocation8 + $0x38] sm:$0xf]
        %v1347 = vld [vmem:[#allocation8 + $0x3c] sm:$0xf]
        %v1364 = vunpack.c.l.b16 %v1332
        %v1365 = vunpack.c.l.b16 %v1333
        %v1366 = vunpack.c.l.b16 %v1334
        %v1367 = vunpack.c.l.b16 %v1335
        %v1368 = vunpack.c.l.b16 %v1336
        %v1369 = vunpack.c.l.b16 %v1337
        %v1370 = vunpack.c.l.b16 %v1338
        %v1371 = vunpack.c.l.b16 %v1339
        %v1372 = vunpack.c.l.b16 %v1340
        %v1373 = vunpack.c.l.b16 %v1341
        %v1374 = vunpack.c.l.b16 %v1342
        %v1375 = vunpack.c.l.b16 %v1343
        %v1376 = vunpack.c.l.b16 %v1344
        %v1377 = vunpack.c.l.b16 %v1345
        %v1378 = vunpack.c.l.b16 %v1346
        %v1379 = vunpack.c.l.b16 %v1347
        %v1380 = vpack.c.b16 %v1365, %v1364
        %v1381 = vpack.c.b16 %v1367, %v1366
        %v1382 = vpack.c.b16 %v1369, %v1368
        %v1383 = vpack.c.b16 %v1371, %v1370
        %v1384 = vpack.c.b16 %v1373, %v1372
        %v1385 = vpack.c.b16 %v1375, %v1374
        %v1386 = vpack.c.b16 %v1377, %v1376
        %v1387 = vpack.c.b16 %v1379, %v1378
        %1396 = vmatprep.subr.bf16.mxu0 0
        %1397 = vmatpush1.bf16.msra.mxu0 %v1380
        %1398 = vmatprep.subr.bf16.mxu0 0
        %1399 = vmatpush1.bf16.msra.mxu0 %v1381
        %1400 = vmatprep.subr.bf16.mxu0 0
        %1401 = vmatpush1.bf16.msra.mxu0 %v1382
        %1402 = vmatprep.subr.bf16.mxu0 0
        %1403 = vmatpush1.bf16.msra.mxu0 %v1383
        %1404 = vmatprep.subr.bf16.mxu0 0
        %1405 = vmatpush1.bf16.msra.mxu0 %v1384
        %1406 = vmatprep.subr.bf16.mxu0 0
        %1407 = vmatpush1.bf16.msra.mxu0 %v1385
        %1408 = vmatprep.subr.bf16.mxu0 0
        %1409 = vmatpush1.bf16.msra.mxu0 %v1386
        %1410 = vmatprep.subr.bf16.mxu0 0
        %1411 = vmatpush1.bf16.msra.mxu0 %v1387
        %1412 = vmatprep.subr.bf16.mxu0 0
        %1413 = vmatpush1.bf16.msra.mxu0 0
        %1414 = vmatprep.subr.bf16.mxu0 0
        %1415 = vmatpush1.bf16.msra.mxu0 0
        %1416 = vmatprep.subr.bf16.mxu0 0
        %1417 = vmatpush1.bf16.msra.mxu0 0
        %1418 = vmatprep.subr.bf16.mxu0 0
        %1419 = vmatpush1.bf16.msra.mxu0 0
        %1420 = vmatprep.subr.bf16.mxu0 0
        %1421 = vmatpush1.bf16.msra.mxu0 0
        %1422 = vmatprep.subr.bf16.mxu0 0
        %1423 = vmatpush1.bf16.msra.mxu0 0
        %1424 = vmatprep.subr.bf16.mxu0 0
        %1425 = vmatpush1.bf16.msra.mxu0 0
        %1426 = vmatprep.subr.bf16.mxu0 0
        %1427 = vmatpush1.bf16.msra.mxu0 0
        %1428 = vmatprep.mubr.bf16.mxu0 0
        %1429 = vmatmul.mubr.bf16.gmra.mrb[0].mxu0 %v1331
        %v1430 = vpop.f32.mrb[0].mxu0
        %v1431 = vadd.f32 0.0, %v1430
        %v1432 = vpop.f32.mrb[0].mxu0
        %v1433 = vpop.f32.mrb[0].mxu0
        %v1434 = vpop.f32.mrb[0].mxu0
        %1435 = vdwg.mxu0
        %v1452 = vunpack.c.l.b16 %v1315
        %v1453 = vunpack.c.l.b16 %v1316
        %v1454 = vunpack.c.l.b16 %v1317
        %v1455 = vunpack.c.l.b16 %v1318
        %v1456 = vunpack.c.l.b16 %v1319
        %v1457 = vunpack.c.l.b16 %v1320
        %v1458 = vunpack.c.l.b16 %v1321
        %v1459 = vunpack.c.l.b16 %v1322
        %v1460 = vunpack.c.l.b16 %v1323
        %v1461 = vunpack.c.l.b16 %v1324
        %v1462 = vunpack.c.l.b16 %v1325
        %v1463 = vunpack.c.l.b16 %v1326
        %v1464 = vunpack.c.l.b16 %v1327
        %v1465 = vunpack.c.l.b16 %v1328
        %v1466 = vunpack.c.l.b16 %v1329
        %v1467 = vunpack.c.l.b16 %v1330
        %v1468 = vpack.c.b16 %v1453, %v1452
        %v1469 = vpack.c.b16 %v1455, %v1454
        %v1470 = vpack.c.b16 %v1457, %v1456
        %v1471 = vpack.c.b16 %v1459, %v1458
        %v1472 = vpack.c.b16 %v1461, %v1460
        %v1473 = vpack.c.b16 %v1463, %v1462
        %v1474 = vpack.c.b16 %v1465, %v1464
        %v1475 = vpack.c.b16 %v1467, %v1466
        %1484 = vmatprep.subr.bf16.mxu0 0
        %1485 = vmatpush1.bf16.msra.mxu0 %v1468
        %1486 = vmatprep.subr.bf16.mxu0 0
        %1487 = vmatpush1.bf16.msra.mxu0 %v1469
        %1488 = vmatprep.subr.bf16.mxu0 0
        %1489 = vmatpush1.bf16.msra.mxu0 %v1470
        %1490 = vmatprep.subr.bf16.mxu0 0
        %1491 = vmatpush1.bf16.msra.mxu0 %v1471
        %1492 = vmatprep.subr.bf16.mxu0 0
        %1493 = vmatpush1.bf16.msra.mxu0 %v1472
        %1494 = vmatprep.subr.bf16.mxu0 0
        %1495 = vmatpush1.bf16.msra.mxu0 %v1473
        %1496 = vmatprep.subr.bf16.mxu0 0
        %1497 = vmatpush1.bf16.msra.mxu0 %v1474
        %1498 = vmatprep.subr.bf16.mxu0 0
        %1499 = vmatpush1.bf16.msra.mxu0 %v1475
        %1500 = vmatprep.subr.bf16.mxu0 0
        %1501 = vmatpush1.bf16.msra.mxu0 0
        %1502 = vmatprep.subr.bf16.mxu0 0
        %1503 = vmatpush1.bf16.msra.mxu0 0
        %1504 = vmatprep.subr.bf16.mxu0 0
        %1505 = vmatpush1.bf16.msra.mxu0 0
        %1506 = vmatprep.subr.bf16.mxu0 0
        %1507 = vmatpush1.bf16.msra.mxu0 0
        %1508 = vmatprep.subr.bf16.mxu0 0
        %1509 = vmatpush1.bf16.msra.mxu0 0
        %1510 = vmatprep.subr.bf16.mxu0 0
        %1511 = vmatpush1.bf16.msra.mxu0 0
        %1512 = vmatprep.subr.bf16.mxu0 0
        %1513 = vmatpush1.bf16.msra.mxu0 0
        %1514 = vmatprep.subr.bf16.mxu0 0
        %1515 = vmatpush1.bf16.msra.mxu0 0
        %1516 = vmatprep.mubr.bf16.mxu0 0
        %1517 = vmatmul.mubr.bf16.gmra.mrb[0].mxu0 %v1313
        %v1518 = vpop.f32.mrb[0].mxu0
        %v1519 = vadd.f32 %v1431, %v1518
        %v1520 = vpop.f32.mrb[0].mxu0
        %v1521 = vpop.f32.mrb[0].mxu0
        %v1522 = vpop.f32.mrb[0].mxu0
        %1523 = vdwg.mxu0
        %v1524 = vadd.f32 %v1519, %v439
        %v1525 = vtanh.pop %v1524
        %1526 = vst [vmem:[#allocation14] sm:$0xff] %v1525
        %v1527 = vpack.c.bf16 %v1525, %v1525
        %v1528 = vld [vmem:[%s664] sm:$0xff]
        %v1529 = vld [vmem:[#allocation10] sm:$0xf]
        %v1530 = vld [vmem:[#allocation10 + $0x4] sm:$0xf]
        %v1531 = vld [vmem:[#allocation10 + $0x8] sm:$0xf]
        %v1532 = vld [vmem:[#allocation10 + $0xc] sm:$0xf]
        %v1533 = vld [vmem:[#allocation10 + $0x10] sm:$0xf]
        %v1534 = vld [vmem:[#allocation10 + $0x14] sm:$0xf]
        %v1535 = vld [vmem:[#allocation10 + $0x18] sm:$0xf]
        %v1536 = vld [vmem:[#allocation10 + $0x1c] sm:$0xf]
        %v1537 = vld [vmem:[#allocation10 + $0x20] sm:$0xf]
        %v1538 = vld [vmem:[#allocation10 + $0x24] sm:$0xf]
        %v1539 = vld [vmem:[#allocation10 + $0x28] sm:$0xf]
        %v1540 = vld [vmem:[#allocation10 + $0x2c] sm:$0xf]
        %v1541 = vld [vmem:[#allocation10 + $0x30] sm:$0xf]
        %v1542 = vld [vmem:[#allocation10 + $0x34] sm:$0xf]
        %v1543 = vld [vmem:[#allocation10 + $0x38] sm:$0xf]
        %v1544 = vld [vmem:[#allocation10 + $0x3c] sm:$0xf]
        %v1545 = vpack.c.bf16 %v1528, %v1528
        %v1546 = vld [vmem:[#allocation11] sm:$0xf]
        %v1547 = vld [vmem:[#allocation11 + $0x4] sm:$0xf]
        %v1548 = vld [vmem:[#allocation11 + $0x8] sm:$0xf]
        %v1549 = vld [vmem:[#allocation11 + $0xc] sm:$0xf]
        %v1550 = vld [vmem:[#allocation11 + $0x10] sm:$0xf]
        %v1551 = vld [vmem:[#allocation11 + $0x14] sm:$0xf]
        %v1552 = vld [vmem:[#allocation11 + $0x18] sm:$0xf]
        %v1553 = vld [vmem:[#allocation11 + $0x1c] sm:$0xf]
        %v1554 = vld [vmem:[#allocation11 + $0x20] sm:$0xf]
        %v1555 = vld [vmem:[#allocation11 + $0x24] sm:$0xf]
        %v1556 = vld [vmem:[#allocation11 + $0x28] sm:$0xf]
        %v1557 = vld [vmem:[#allocation11 + $0x2c] sm:$0xf]
        %v1558 = vld [vmem:[#allocation11 + $0x30] sm:$0xf]
        %v1559 = vld [vmem:[#allocation11 + $0x34] sm:$0xf]
        %v1560 = vld [vmem:[#allocation11 + $0x38] sm:$0xf]
        %v1561 = vld [vmem:[#allocation11 + $0x3c] sm:$0xf]
        %v1578 = vunpack.c.l.b16 %v1546
        %v1579 = vunpack.c.l.b16 %v1547
        %v1580 = vunpack.c.l.b16 %v1548
        %v1581 = vunpack.c.l.b16 %v1549
        %v1582 = vunpack.c.l.b16 %v1550
        %v1583 = vunpack.c.l.b16 %v1551
        %v1584 = vunpack.c.l.b16 %v1552
        %v1585 = vunpack.c.l.b16 %v1553
        %v1586 = vunpack.c.l.b16 %v1554
        %v1587 = vunpack.c.l.b16 %v1555
        %v1588 = vunpack.c.l.b16 %v1556
        %v1589 = vunpack.c.l.b16 %v1557
        %v1590 = vunpack.c.l.b16 %v1558
        %v1591 = vunpack.c.l.b16 %v1559
        %v1592 = vunpack.c.l.b16 %v1560
        %v1593 = vunpack.c.l.b16 %v1561
        %v1594 = vpack.c.b16 %v1579, %v1578
        %v1595 = vpack.c.b16 %v1581, %v1580
        %v1596 = vpack.c.b16 %v1583, %v1582
        %v1597 = vpack.c.b16 %v1585, %v1584
        %v1598 = vpack.c.b16 %v1587, %v1586
        %v1599 = vpack.c.b16 %v1589, %v1588
        %v1600 = vpack.c.b16 %v1591, %v1590
        %v1601 = vpack.c.b16 %v1593, %v1592
        %1610 = vmatprep.subr.bf16.mxu0 0
        %1611 = vmatpush1.bf16.msra.mxu0 %v1594
        %1612 = vmatprep.subr.bf16.mxu0 0
        %1613 = vmatpush1.bf16.msra.mxu0 %v1595
        %1614 = vmatprep.subr.bf16.mxu0 0
        %1615 = vmatpush1.bf16.msra.mxu0 %v1596
        %1616 = vmatprep.subr.bf16.mxu0 0
        %1617 = vmatpush1.bf16.msra.mxu0 %v1597
        %1618 = vmatprep.subr.bf16.mxu0 0
        %1619 = vmatpush1.bf16.msra.mxu0 %v1598
        %1620 = vmatprep.subr.bf16.mxu0 0
        %1621 = vmatpush1.bf16.msra.mxu0 %v1599
        %1622 = vmatprep.subr.bf16.mxu0 0
        %1623 = vmatpush1.bf16.msra.mxu0 %v1600
        %1624 = vmatprep.subr.bf16.mxu0 0
        %1625 = vmatpush1.bf16.msra.mxu0 %v1601
        %1626 = vmatprep.subr.bf16.mxu0 0
        %1627 = vmatpush1.bf16.msra.mxu0 0
        %1628 = vmatprep.subr.bf16.mxu0 0
        %1629 = vmatpush1.bf16.msra.mxu0 0
        %1630 = vmatprep.subr.bf16.mxu0 0
        %1631 = vmatpush1.bf16.msra.mxu0 0
        %1632 = vmatprep.subr.bf16.mxu0 0
        %1633 = vmatpush1.bf16.msra.mxu0 0
        %1634 = vmatprep.subr.bf16.mxu0 0
        %1635 = vmatpush1.bf16.msra.mxu0 0
        %1636 = vmatprep.subr.bf16.mxu0 0
        %1637 = vmatpush1.bf16.msra.mxu0 0
        %1638 = vmatprep.subr.bf16.mxu0 0
        %1639 = vmatpush1.bf16.msra.mxu0 0
        %1640 = vmatprep.subr.bf16.mxu0 0
        %1641 = vmatpush1.bf16.msra.mxu0 0
        %1642 = vmatprep.mubr.bf16.mxu0 0
        %1643 = vmatmul.mubr.bf16.gmra.mrb[0].mxu0 %v1545
        %v1644 = vpop.f32.mrb[0].mxu0
        %v1645 = vadd.f32 0.0, %v1644
        %v1646 = vpop.f32.mrb[0].mxu0
        %v1647 = vpop.f32.mrb[0].mxu0
        %v1648 = vpop.f32.mrb[0].mxu0
        %1649 = vdwg.mxu0
        %v1666 = vunpack.c.l.b16 %v1529
        %v1667 = vunpack.c.l.b16 %v1530
        %v1668 = vunpack.c.l.b16 %v1531
        %v1669 = vunpack.c.l.b16 %v1532
        %v1670 = vunpack.c.l.b16 %v1533
        %v1671 = vunpack.c.l.b16 %v1534
        %v1672 = vunpack.c.l.b16 %v1535
        %v1673 = vunpack.c.l.b16 %v1536
        %v1674 = vunpack.c.l.b16 %v1537
        %v1675 = vunpack.c.l.b16 %v1538
        %v1676 = vunpack.c.l.b16 %v1539
        %v1677 = vunpack.c.l.b16 %v1540
        %v1678 = vunpack.c.l.b16 %v1541
        %v1679 = vunpack.c.l.b16 %v1542
        %v1680 = vunpack.c.l.b16 %v1543
        %v1681 = vunpack.c.l.b16 %v1544
        %v1682 = vpack.c.b16 %v1667, %v1666
        %v1683 = vpack.c.b16 %v1669, %v1668
        %v1684 = vpack.c.b16 %v1671, %v1670
        %v1685 = vpack.c.b16 %v1673, %v1672
        %v1686 = vpack.c.b16 %v1675, %v1674
        %v1687 = vpack.c.b16 %v1677, %v1676
        %v1688 = vpack.c.b16 %v1679, %v1678
        %v1689 = vpack.c.b16 %v1681, %v1680
        %1698 = vmatprep.subr.bf16.mxu0 0
        %1699 = vmatpush1.bf16.msra.mxu0 %v1682
        %1700 = vmatprep.subr.bf16.mxu0 0
        %1701 = vmatpush1.bf16.msra.mxu0 %v1683
        %1702 = vmatprep.subr.bf16.mxu0 0
        %1703 = vmatpush1.bf16.msra.mxu0 %v1684
        %1704 = vmatprep.subr.bf16.mxu0 0
        %1705 = vmatpush1.bf16.msra.mxu0 %v1685
        %1706 = vmatprep.subr.bf16.mxu0 0
        %1707 = vmatpush1.bf16.msra.mxu0 %v1686
        %1708 = vmatprep.subr.bf16.mxu0 0
        %1709 = vmatpush1.bf16.msra.mxu0 %v1687
        %1710 = vmatprep.subr.bf16.mxu0 0
        %1711 = vmatpush1.bf16.msra.mxu0 %v1688
        %1712 = vmatprep.subr.bf16.mxu0 0
        %1713 = vmatpush1.bf16.msra.mxu0 %v1689
        %1714 = vmatprep.subr.bf16.mxu0 0
        %1715 = vmatpush1.bf16.msra.mxu0 0
        %1716 = vmatprep.subr.bf16.mxu0 0
        %1717 = vmatpush1.bf16.msra.mxu0 0
        %1718 = vmatprep.subr.bf16.mxu0 0
        %1719 = vmatpush1.bf16.msra.mxu0 0
        %1720 = vmatprep.subr.bf16.mxu0 0
        %1721 = vmatpush1.bf16.msra.mxu0 0
        %1722 = vmatprep.subr.bf16.mxu0 0
        %1723 = vmatpush1.bf16.msra.mxu0 0
        %1724 = vmatprep.subr.bf16.mxu0 0
        %1725 = vmatpush1.bf16.msra.mxu0 0
        %1726 = vmatprep.subr.bf16.mxu0 0
        %1727 = vmatpush1.bf16.msra.mxu0 0
        %1728 = vmatprep.subr.bf16.mxu0 0
        %1729 = vmatpush1.bf16.msra.mxu0 0
        %1730 = vmatprep.mubr.bf16.mxu0 0
        %1731 = vmatmul.mubr.bf16.gmra.mrb[0].mxu0 %v1527
        %v1732 = vpop.f32.mrb[0].mxu0
        %v1733 = vadd.f32 %v1645, %v1732
        %v1734 = vpop.f32.mrb[0].mxu0
        %v1735 = vpop.f32.mrb[0].mxu0
        %v1736 = vpop.f32.mrb[0].mxu0
        %1737 = vdwg.mxu0
        %v1738 = vadd.f32 %v1733, %v446
        %v1739 = vtanh.pop %v1738
        %1740 = vst [vmem:[%s664] sm:$0xff] %v1739
        %s1741 = scalar_lea.vmem %s420, 16 [#allocation13]
        %1742 = vst [vmem:[%s1741] sm:$0xff] %v1739
        %s1743 = scalar_lea.vmem %s368, 24 [#allocation2]
        %v1744 = vld [vmem:[%s1743] sm:$0xff]
        %v1745 = vpack.c.bf16 %v1744, %v1744
        %v1746 = vld [vmem:[#allocation14] sm:$0xff]
        %v1747 = vld [vmem:[#allocation7] sm:$0xf]
        %v1748 = vld [vmem:[#allocation7 + $0x4] sm:$0xf]
        %v1749 = vld [vmem:[#allocation7 + $0x8] sm:$0xf]
        %v1750 = vld [vmem:[#allocation7 + $0xc] sm:$0xf]
        %v1751 = vld [vmem:[#allocation7 + $0x10] sm:$0xf]
        %v1752 = vld [vmem:[#allocation7 + $0x14] sm:$0xf]
        %v1753 = vld [vmem:[#allocation7 + $0x18] sm:$0xf]
        %v1754 = vld [vmem:[#allocation7 + $0x1c] sm:$0xf]
        %v1755 = vld [vmem:[#allocation7 + $0x20] sm:$0xf]
        %v1756 = vld [vmem:[#allocation7 + $0x24] sm:$0xf]
        %v1757 = vld [vmem:[#allocation7 + $0x28] sm:$0xf]
        %v1758 = vld [vmem:[#allocation7 + $0x2c] sm:$0xf]
        %v1759 = vld [vmem:[#allocation7 + $0x30] sm:$0xf]
        %v1760 = vld [vmem:[#allocation7 + $0x34] sm:$0xf]
        %v1761 = vld [vmem:[#allocation7 + $0x38] sm:$0xf]
        %v1762 = vld [vmem:[#allocation7 + $0x3c] sm:$0xf]
        %v1763 = vpack.c.bf16 %v1746, %v1746
        %v1764 = vld [vmem:[#allocation8] sm:$0xf]
        %v1765 = vld [vmem:[#allocation8 + $0x4] sm:$0xf]
        %v1766 = vld [vmem:[#allocation8 + $0x8] sm:$0xf]
        %v1767 = vld [vmem:[#allocation8 + $0xc] sm:$0xf]
        %v1768 = vld [vmem:[#allocation8 + $0x10] sm:$0xf]
        %v1769 = vld [vmem:[#allocation8 + $0x14] sm:$0xf]
        %v1770 = vld [vmem:[#allocation8 + $0x18] sm:$0xf]
        %v1771 = vld [vmem:[#allocation8 + $0x1c] sm:$0xf]
        %v1772 = vld [vmem:[#allocation8 + $0x20] sm:$0xf]
        %v1773 = vld [vmem:[#allocation8 + $0x24] sm:$0xf]
        %v1774 = vld [vmem:[#allocation8 + $0x28] sm:$0xf]
        %v1775 = vld [vmem:[#allocation8 + $0x2c] sm:$0xf]
        %v1776 = vld [vmem:[#allocation8 + $0x30] sm:$0xf]
        %v1777 = vld [vmem:[#allocation8 + $0x34] sm:$0xf]
        %v1778 = vld [vmem:[#allocation8 + $0x38] sm:$0xf]
        %v1779 = vld [vmem:[#allocation8 + $0x3c] sm:$0xf]
        %v1796 = vunpack.c.l.b16 %v1764
        %v1797 = vunpack.c.l.b16 %v1765
        %v1798 = vunpack.c.l.b16 %v1766
        %v1799 = vunpack.c.l.b16 %v1767
        %v1800 = vunpack.c.l.b16 %v1768
        %v1801 = vunpack.c.l.b16 %v1769
        %v1802 = vunpack.c.l.b16 %v1770
        %v1803 = vunpack.c.l.b16 %v1771
        %v1804 = vunpack.c.l.b16 %v1772
        %v1805 = vunpack.c.l.b16 %v1773
        %v1806 = vunpack.c.l.b16 %v1774
        %v1807 = vunpack.c.l.b16 %v1775
        %v1808 = vunpack.c.l.b16 %v1776
        %v1809 = vunpack.c.l.b16 %v1777
        %v1810 = vunpack.c.l.b16 %v1778
        %v1811 = vunpack.c.l.b16 %v1779
        %v1812 = vpack.c.b16 %v1797, %v1796
        %v1813 = vpack.c.b16 %v1799, %v1798
        %v1814 = vpack.c.b16 %v1801, %v1800
        %v1815 = vpack.c.b16 %v1803, %v1802
        %v1816 = vpack.c.b16 %v1805, %v1804
        %v1817 = vpack.c.b16 %v1807, %v1806
        %v1818 = vpack.c.b16 %v1809, %v1808
        %v1819 = vpack.c.b16 %v1811, %v1810
        %1828 = vmatprep.subr.bf16.mxu0 0
        %1829 = vmatpush1.bf16.msra.mxu0 %v1812
        %1830 = vmatprep.subr.bf16.mxu0 0
        %1831 = vmatpush1.bf16.msra.mxu0 %v1813
        %1832 = vmatprep.subr.bf16.mxu0 0
        %1833 = vmatpush1.bf16.msra.mxu0 %v1814
        %1834 = vmatprep.subr.bf16.mxu0 0
        %1835 = vmatpush1.bf16.msra.mxu0 %v1815
        %1836 = vmatprep.subr.bf16.mxu0 0
        %1837 = vmatpush1.bf16.msra.mxu0 %v1816
        %1838 = vmatprep.subr.bf16.mxu0 0
        %1839 = vmatpush1.bf16.msra.mxu0 %v1817
        %1840 = vmatprep.subr.bf16.mxu0 0
        %1841 = vmatpush1.bf16.msra.mxu0 %v1818
        %1842 = vmatprep.subr.bf16.mxu0 0
        %1843 = vmatpush1.bf16.msra.mxu0 %v1819
        %1844 = vmatprep.subr.bf16.mxu0 0
        %1845 = vmatpush1.bf16.msra.mxu0 0
        %1846 = vmatprep.subr.bf16.mxu0 0
        %1847 = vmatpush1.bf16.msra.mxu0 0
        %1848 = vmatprep.subr.bf16.mxu0 0
        %1849 = vmatpush1.bf16.msra.mxu0 0
        %1850 = vmatprep.subr.bf16.mxu0 0
        %1851 = vmatpush1.bf16.msra.mxu0 0
        %1852 = vmatprep.subr.bf16.mxu0 0
        %1853 = vmatpush1.bf16.msra.mxu0 0
        %1854 = vmatprep.subr.bf16.mxu0 0
        %1855 = vmatpush1.bf16.msra.mxu0 0
        %1856 = vmatprep.subr.bf16.mxu0 0
        %1857 = vmatpush1.bf16.msra.mxu0 0
        %1858 = vmatprep.subr.bf16.mxu0 0
        %1859 = vmatpush1.bf16.msra.mxu0 0
        %1860 = vmatprep.mubr.bf16.mxu0 0
        %1861 = vmatmul.mubr.bf16.gmra.mrb[0].mxu0 %v1763
        %v1862 = vpop.f32.mrb[0].mxu0
        %v1863 = vadd.f32 0.0, %v1862
        %v1864 = vpop.f32.mrb[0].mxu0
        %v1865 = vpop.f32.mrb[0].mxu0
        %v1866 = vpop.f32.mrb[0].mxu0
        %1867 = vdwg.mxu0
        %v1884 = vunpack.c.l.b16 %v1747
        %v1885 = vunpack.c.l.b16 %v1748
        %v1886 = vunpack.c.l.b16 %v1749
        %v1887 = vunpack.c.l.b16 %v1750
        %v1888 = vunpack.c.l.b16 %v1751
        %v1889 = vunpack.c.l.b16 %v1752
        %v1890 = vunpack.c.l.b16 %v1753
        %v1891 = vunpack.c.l.b16 %v1754
        %v1892 = vunpack.c.l.b16 %v1755
        %v1893 = vunpack.c.l.b16 %v1756
        %v1894 = vunpack.c.l.b16 %v1757
        %v1895 = vunpack.c.l.b16 %v1758
        %v1896 = vunpack.c.l.b16 %v1759
        %v1897 = vunpack.c.l.b16 %v1760
        %v1898 = vunpack.c.l.b16 %v1761
        %v1899 = vunpack.c.l.b16 %v1762
        %v1900 = vpack.c.b16 %v1885, %v1884
        %v1901 = vpack.c.b16 %v1887, %v1886
        %v1902 = vpack.c.b16 %v1889, %v1888
        %v1903 = vpack.c.b16 %v1891, %v1890
        %v1904 = vpack.c.b16 %v1893, %v1892
        %v1905 = vpack.c.b16 %v1895, %v1894
        %v1906 = vpack.c.b16 %v1897, %v1896
        %v1907 = vpack.c.b16 %v1899, %v1898
        %1916 = vmatprep.subr.bf16.mxu0 0
        %1917 = vmatpush1.bf16.msra.mxu0 %v1900
        %1918 = vmatprep.subr.bf16.mxu0 0
        %1919 = vmatpush1.bf16.msra.mxu0 %v1901
        %1920 = vmatprep.subr.bf16.mxu0 0
        %1921 = vmatpush1.bf16.msra.mxu0 %v1902
        %1922 = vmatprep.subr.bf16.mxu0 0
        %1923 = vmatpush1.bf16.msra.mxu0 %v1903
        %1924 = vmatprep.subr.bf16.mxu0 0
        %1925 = vmatpush1.bf16.msra.mxu0 %v1904
        %1926 = vmatprep.subr.bf16.mxu0 0
        %1927 = vmatpush1.bf16.msra.mxu0 %v1905
        %1928 = vmatprep.subr.bf16.mxu0 0
        %1929 = vmatpush1.bf16.msra.mxu0 %v1906
        %1930 = vmatprep.subr.bf16.mxu0 0
        %1931 = vmatpush1.bf16.msra.mxu0 %v1907
        %1932 = vmatprep.subr.bf16.mxu0 0
        %1933 = vmatpush1.bf16.msra.mxu0 0
        %1934 = vmatprep.subr.bf16.mxu0 0
        %1935 = vmatpush1.bf16.msra.mxu0 0
        %1936 = vmatprep.subr.bf16.mxu0 0
        %1937 = vmatpush1.bf16.msra.mxu0 0
        %1938 = vmatprep.subr.bf16.mxu0 0
        %1939 = vmatpush1.bf16.msra.mxu0 0
        %1940 = vmatprep.subr.bf16.mxu0 0
        %1941 = vmatpush1.bf16.msra.mxu0 0
        %1942 = vmatprep.subr.bf16.mxu0 0
        %1943 = vmatpush1.bf16.msra.mxu0 0
        %1944 = vmatprep.subr.bf16.mxu0 0
        %1945 = vmatpush1.bf16.msra.mxu0 0
        %1946 = vmatprep.subr.bf16.mxu0 0
        %1947 = vmatpush1.bf16.msra.mxu0 0
        %1948 = vmatprep.mubr.bf16.mxu0 0
        %1949 = vmatmul.mubr.bf16.gmra.mrb[0].mxu0 %v1745
        %v1950 = vpop.f32.mrb[0].mxu0
        %v1951 = vadd.f32 %v1863, %v1950
        %v1952 = vpop.f32.mrb[0].mxu0
        %v1953 = vpop.f32.mrb[0].mxu0
        %v1954 = vpop.f32.mrb[0].mxu0
        %1955 = vdwg.mxu0
        %v1956 = vadd.f32 %v1951, %v439
        %v1957 = vtanh.pop %v1956
        %1958 = vst [vmem:[#allocation14] sm:$0xff] %v1957
        %v1959 = vpack.c.bf16 %v1957, %v1957
        %v1960 = vld [vmem:[%s664] sm:$0xff]
        %v1961 = vld [vmem:[#allocation10] sm:$0xf]
        %v1962 = vld [vmem:[#allocation10 + $0x4] sm:$0xf]
        %v1963 = vld [vmem:[#allocation10 + $0x8] sm:$0xf]
        %v1964 = vld [vmem:[#allocation10 + $0xc] sm:$0xf]
        %v1965 = vld [vmem:[#allocation10 + $0x10] sm:$0xf]
        %v1966 = vld [vmem:[#allocation10 + $0x14] sm:$0xf]
        %v1967 = vld [vmem:[#allocation10 + $0x18] sm:$0xf]
        %v1968 = vld [vmem:[#allocation10 + $0x1c] sm:$0xf]
        %v1969 = vld [vmem:[#allocation10 + $0x20] sm:$0xf]
        %v1970 = vld [vmem:[#allocation10 + $0x24] sm:$0xf]
        %v1971 = vld [vmem:[#allocation10 + $0x28] sm:$0xf]
        %v1972 = vld [vmem:[#allocation10 + $0x2c] sm:$0xf]
        %v1973 = vld [vmem:[#allocation10 + $0x30] sm:$0xf]
        %v1974 = vld [vmem:[#allocation10 + $0x34] sm:$0xf]
        %v1975 = vld [vmem:[#allocation10 + $0x38] sm:$0xf]
        %v1976 = vld [vmem:[#allocation10 + $0x3c] sm:$0xf]
        %v1977 = vpack.c.bf16 %v1960, %v1960
        %v1978 = vld [vmem:[#allocation11] sm:$0xf]
        %v1979 = vld [vmem:[#allocation11 + $0x4] sm:$0xf]
        %v1980 = vld [vmem:[#allocation11 + $0x8] sm:$0xf]
        %v1981 = vld [vmem:[#allocation11 + $0xc] sm:$0xf]
        %v1982 = vld [vmem:[#allocation11 + $0x10] sm:$0xf]
        %v1983 = vld [vmem:[#allocation11 + $0x14] sm:$0xf]
        %v1984 = vld [vmem:[#allocation11 + $0x18] sm:$0xf]
        %v1985 = vld [vmem:[#allocation11 + $0x1c] sm:$0xf]
        %v1986 = vld [vmem:[#allocation11 + $0x20] sm:$0xf]
        %v1987 = vld [vmem:[#allocation11 + $0x24] sm:$0xf]
        %v1988 = vld [vmem:[#allocation11 + $0x28] sm:$0xf]
        %v1989 = vld [vmem:[#allocation11 + $0x2c] sm:$0xf]
        %v1990 = vld [vmem:[#allocation11 + $0x30] sm:$0xf]
        %v1991 = vld [vmem:[#allocation11 + $0x34] sm:$0xf]
        %v1992 = vld [vmem:[#allocation11 + $0x38] sm:$0xf]
        %v1993 = vld [vmem:[#allocation11 + $0x3c] sm:$0xf]
        %v2010 = vunpack.c.l.b16 %v1978
        %v2011 = vunpack.c.l.b16 %v1979
        %v2012 = vunpack.c.l.b16 %v1980
        %v2013 = vunpack.c.l.b16 %v1981
        %v2014 = vunpack.c.l.b16 %v1982
        %v2015 = vunpack.c.l.b16 %v1983
        %v2016 = vunpack.c.l.b16 %v1984
        %v2017 = vunpack.c.l.b16 %v1985
        %v2018 = vunpack.c.l.b16 %v1986
        %v2019 = vunpack.c.l.b16 %v1987
        %v2020 = vunpack.c.l.b16 %v1988
        %v2021 = vunpack.c.l.b16 %v1989
        %v2022 = vunpack.c.l.b16 %v1990
        %v2023 = vunpack.c.l.b16 %v1991
        %v2024 = vunpack.c.l.b16 %v1992
        %v2025 = vunpack.c.l.b16 %v1993
        %v2026 = vpack.c.b16 %v2011, %v2010
        %v2027 = vpack.c.b16 %v2013, %v2012
        %v2028 = vpack.c.b16 %v2015, %v2014
        %v2029 = vpack.c.b16 %v2017, %v2016
        %v2030 = vpack.c.b16 %v2019, %v2018
        %v2031 = vpack.c.b16 %v2021, %v2020
        %v2032 = vpack.c.b16 %v2023, %v2022
        %v2033 = vpack.c.b16 %v2025, %v2024
        %2042 = vmatprep.subr.bf16.mxu0 0
        %2043 = vmatpush1.bf16.msra.mxu0 %v2026
        %2044 = vmatprep.subr.bf16.mxu0 0
        %2045 = vmatpush1.bf16.msra.mxu0 %v2027
        %2046 = vmatprep.subr.bf16.mxu0 0
        %2047 = vmatpush1.bf16.msra.mxu0 %v2028
        %2048 = vmatprep.subr.bf16.mxu0 0
        %2049 = vmatpush1.bf16.msra.mxu0 %v2029
        %2050 = vmatprep.subr.bf16.mxu0 0
        %2051 = vmatpush1.bf16.msra.mxu0 %v2030
        %2052 = vmatprep.subr.bf16.mxu0 0
        %2053 = vmatpush1.bf16.msra.mxu0 %v2031
        %2054 = vmatprep.subr.bf16.mxu0 0
        %2055 = vmatpush1.bf16.msra.mxu0 %v2032
        %2056 = vmatprep.subr.bf16.mxu0 0
        %2057 = vmatpush1.bf16.msra.mxu0 %v2033
        %2058 = vmatprep.subr.bf16.mxu0 0
        %2059 = vmatpush1.bf16.msra.mxu0 0
        %2060 = vmatprep.subr.bf16.mxu0 0
        %2061 = vmatpush1.bf16.msra.mxu0 0
        %2062 = vmatprep.subr.bf16.mxu0 0
        %2063 = vmatpush1.bf16.msra.mxu0 0
        %2064 = vmatprep.subr.bf16.mxu0 0
        %2065 = vmatpush1.bf16.msra.mxu0 0
        %2066 = vmatprep.subr.bf16.mxu0 0
        %2067 = vmatpush1.bf16.msra.mxu0 0
        %2068 = vmatprep.subr.bf16.mxu0 0
        %2069 = vmatpush1.bf16.msra.mxu0 0
        %2070 = vmatprep.subr.bf16.mxu0 0
        %2071 = vmatpush1.bf16.msra.mxu0 0
        %2072 = vmatprep.subr.bf16.mxu0 0
        %2073 = vmatpush1.bf16.msra.mxu0 0
        %2074 = vmatprep.mubr.bf16.mxu0 0
        %2075 = vmatmul.mubr.bf16.gmra.mrb[0].mxu0 %v1977
        %v2076 = vpop.f32.mrb[0].mxu0
        %v2077 = vadd.f32 0.0, %v2076
        %v2078 = vpop.f32.mrb[0].mxu0
        %v2079 = vpop.f32.mrb[0].mxu0
        %v2080 = vpop.f32.mrb[0].mxu0
        %2081 = vdwg.mxu0
        %v2098 = vunpack.c.l.b16 %v1961
        %v2099 = vunpack.c.l.b16 %v1962
        %v2100 = vunpack.c.l.b16 %v1963
        %v2101 = vunpack.c.l.b16 %v1964
        %v2102 = vunpack.c.l.b16 %v1965
        %v2103 = vunpack.c.l.b16 %v1966
        %v2104 = vunpack.c.l.b16 %v1967
        %v2105 = vunpack.c.l.b16 %v1968
        %v2106 = vunpack.c.l.b16 %v1969
        %v2107 = vunpack.c.l.b16 %v1970
        %v2108 = vunpack.c.l.b16 %v1971
        %v2109 = vunpack.c.l.b16 %v1972
        %v2110 = vunpack.c.l.b16 %v1973
        %v2111 = vunpack.c.l.b16 %v1974
        %v2112 = vunpack.c.l.b16 %v1975
        %v2113 = vunpack.c.l.b16 %v1976
        %v2114 = vpack.c.b16 %v2099, %v2098
        %v2115 = vpack.c.b16 %v2101, %v2100
        %v2116 = vpack.c.b16 %v2103, %v2102
        %v2117 = vpack.c.b16 %v2105, %v2104
        %v2118 = vpack.c.b16 %v2107, %v2106
        %v2119 = vpack.c.b16 %v2109, %v2108
        %v2120 = vpack.c.b16 %v2111, %v2110
        %v2121 = vpack.c.b16 %v2113, %v2112
        %2130 = vmatprep.subr.bf16.mxu0 0
        %2131 = vmatpush1.bf16.msra.mxu0 %v2114
        %2132 = vmatprep.subr.bf16.mxu0 0
        %2133 = vmatpush1.bf16.msra.mxu0 %v2115
        %2134 = vmatprep.subr.bf16.mxu0 0
        %2135 = vmatpush1.bf16.msra.mxu0 %v2116
        %2136 = vmatprep.subr.bf16.mxu0 0
        %2137 = vmatpush1.bf16.msra.mxu0 %v2117
        %2138 = vmatprep.subr.bf16.mxu0 0
        %2139 = vmatpush1.bf16.msra.mxu0 %v2118
        %2140 = vmatprep.subr.bf16.mxu0 0
        %2141 = vmatpush1.bf16.msra.mxu0 %v2119
        %2142 = vmatprep.subr.bf16.mxu0 0
        %2143 = vmatpush1.bf16.msra.mxu0 %v2120
        %2144 = vmatprep.subr.bf16.mxu0 0
        %2145 = vmatpush1.bf16.msra.mxu0 %v2121
        %2146 = vmatprep.subr.bf16.mxu0 0
        %2147 = vmatpush1.bf16.msra.mxu0 0
        %2148 = vmatprep.subr.bf16.mxu0 0
        %2149 = vmatpush1.bf16.msra.mxu0 0
        %2150 = vmatprep.subr.bf16.mxu0 0
        %2151 = vmatpush1.bf16.msra.mxu0 0
        %2152 = vmatprep.subr.bf16.mxu0 0
        %2153 = vmatpush1.bf16.msra.mxu0 0
        %2154 = vmatprep.subr.bf16.mxu0 0
        %2155 = vmatpush1.bf16.msra.mxu0 0
        %2156 = vmatprep.subr.bf16.mxu0 0
        %2157 = vmatpush1.bf16.msra.mxu0 0
        %2158 = vmatprep.subr.bf16.mxu0 0
        %2159 = vmatpush1.bf16.msra.mxu0 0
        %2160 = vmatprep.subr.bf16.mxu0 0
        %2161 = vmatpush1.bf16.msra.mxu0 0
        %2162 = vmatprep.mubr.bf16.mxu0 0
        %2163 = vmatmul.mubr.bf16.gmra.mrb[0].mxu0 %v1959
        %v2164 = vpop.f32.mrb[0].mxu0
        %v2165 = vadd.f32 %v2077, %v2164
        %v2166 = vpop.f32.mrb[0].mxu0
        %v2167 = vpop.f32.mrb[0].mxu0
        %v2168 = vpop.f32.mrb[0].mxu0
        %2169 = vdwg.mxu0
        %v2170 = vadd.f32 %v2165, %v446
        %v2171 = vtanh.pop %v2170
        %2172 = vst [vmem:[%s664] sm:$0xff] %v2171
        %s2173 = scalar_lea.vmem %s420, 24 [#allocation13]
        %2174 = vst [vmem:[%s2173] sm:$0xff] %v2171
        %s2175 = sand.u32 %s212, 1
        %s2176 = scalar_lea.sflag [#allocation4], %s2175
        %s2177 = sand.u32 %s212, 1
        %s2178 = smul.addr %s2177, 32
        %s2179 = scalar_lea.vmem [#allocation13], %s2178
        // Predicated region
        $region81: #{tpu_custom_call.1} parent=51 // pred_check
          %p2180 = pneg %p222
        $region82: #{tpu_custom_call.1} parent=51 // pred_check_branch
          %2182 = sbr.rel (%p2180) target = $region84
        $region83: #{tpu_custom_call.1} parent=51 // pred_region
          %s2183 = smul.u32 4, %s31
          %s2185 = ssub.s32 512, 512
          %2186 = vsyncadd %s2176, %s2185
          %s2187 = smul.addr %s2183, 128
          %s2188 = scalar_lea.hbm %s8, %s2187
          %s2189 = sshll.u32 %s2179, 4
          %s2190 = int_to_ptr.vmem [resolvable:$true] %s2189
          %2195 = dma.vmem_to_hbm [thread:$0]  %s2190, 512, %s2188, %s2176, 128, 128, 8
        $region84: #{tpu_custom_call.1} parent=51 // pred_fallthru
          _
        // Predicated region
        $region85: #{tpu_custom_call.1} parent=51 // pred_check
          %p2196 = pneg %p243
        $region86: #{tpu_custom_call.1} parent=51 // pred_check_branch
          %2198 = sbr.rel (%p2196) target = $region88
        $region87: #{tpu_custom_call.1} parent=51 // pred_region
          %s2200 = ssub.s32 256, 256
          %2201 = vsyncadd [#allocation15], %s2200
          %s2202 = sshll.u32 [#allocation14], 4
          %s2203 = int_to_ptr.vmem [resolvable:$true] %s2202
          %2208 = dma.vmem_to_hbm [thread:$0]  %s2203, 256, %s9, [#allocation15], 128, 128, 8
        $region88: #{tpu_custom_call.1} parent=51 // pred_fallthru
          _
        // Predicated region
        $region89: #{tpu_custom_call.1} parent=51 // pred_check
          %p2209 = pneg %p243
        $region90: #{tpu_custom_call.1} parent=51 // pred_check_branch
          %2211 = sbr.rel (%p2209) target = $region92
        $region91: #{tpu_custom_call.1} parent=51 // pred_region
          %2212 = dma.done [#allocation15], 256
        $region92: #{tpu_custom_call.1} parent=51 // pred_fallthru
          _
      $region52: #{tpu_custom_call.1} parent=5 // pred_fallthru
        _
      %p2213 = scmp.le.s32.totalorder 2, %s26
      // Predicated region
      $region93: #{tpu_custom_call.1} parent=5 // pred_check
        %p2214 = pneg %p2213
      $region94: #{tpu_custom_call.1} parent=5 // pred_check_branch
        %2216 = sbr.rel (%p2214) target = $region96
      $region95: #{tpu_custom_call.1} parent=5 // pred_region
        %s2217 = ssub.s32 %s26, 2
        // Predicated region
        $region97: #{tpu_custom_call.1} parent=95 // pred_check
          %p2218 = pneg %p228
        $region98: #{tpu_custom_call.1} parent=95 // pred_check_branch
          %2220 = sbr.rel (%p2218) target = $region100
        $region99: #{tpu_custom_call.1} parent=95 // pred_region
          %s2221 = sand.u32 %s213, 1
          %s2222 = scalar_lea.sflag [#allocation4], %s2221
          %s2223 = sand.u32 %s213, 1
          %s2224 = smul.addr %s2223, 32
          %s2225 = scalar_lea.vmem [#allocation13], %s2224
          %2226 = dma.done %s2222, 512
        $region100: #{tpu_custom_call.1} parent=95 // pred_fallthru
          _
      $region96: #{tpu_custom_call.1} parent=5 // pred_fallthru
        _
    $region6: #{tpu_custom_call.1} parent=1 // loop_footer
      %s30 = sadd.s32 1, %s26
    $region7: #{tpu_custom_call.1} parent=1 // loop_footer_branch
      %25 = sbr.rel target = $region3
    $region8: #{tpu_custom_call.1} parent=1 // loop_exit
      _
    %2227 = vsyncpa [#allocation3], 1
    %s2228 = scalar_lea.sflag [#allocation3], 1
    %2229 = vsyncpa %s2228, 1
    %2230 = vsyncpa [#allocation6], 1
    %2231 = vsyncpa [#allocation9], 1
    %2232 = vsyncpa [#allocation12], 1
    %2233 = vsyncpa [#allocation4], 1
    %s2234 = scalar_lea.sflag [#allocation4], 1
    %2235 = vsyncpa %s2234, 1
    %2236 = vsyncpa [#allocation15], 1

</llo_original>
